<compile_context>
chip_gen: v7x
topology: tpu7x:2x2x1
jax: 0.10.0
libtpu: 0.0.40
codegen_flags: <defaults>
</compile_context>

<pallas_src>
import jax
import jax.numpy as jnp
from jax.experimental import pallas as pl
from jax.experimental.pallas import tpu as pltpu

# TODO(synk): training-mode Dropout (Bernoulli mask + 1/(1-p) scaling) is omitted;
# this kernel reproduces the deterministic eval-mode forward pass.


def _round_up(n, m):
    return ((n + m - 1) // m) * m


def _choose_tiling(batch, max_tb):
    """Pad only to the next multiple of 128 and prefer one big tile."""
    max_tb = max(128, _round_up(max_tb, 128))
    padded_b = _round_up(batch, 128)
    if padded_b <= max_tb:
        return padded_b, padded_b                    # single grid step
    # Largest multiple-of-128 tile <= max_tb that divides the 128-padded batch.
    m = padded_b // 128
    best = 1
    for d in range(1, max_tb // 128 + 1):
        if m % d == 0:
            best = d
    tb = 128 * best
    if tb * 4 < max_tb:
        # Hostile factorization: pad a little further (< tb extra rows) so big
        # tiles divide the padded batch exactly.
        tb = max_tb
        padded_b = _round_up(batch, tb)
    return padded_b, tb


def _mlp_kernel(x_ref, w1t_ref, b1_ref, w2t_ref, b2_ref, w3t_ref, b3_ref, o_ref):
    # Batch-on-lanes: activations are (H, TB) with the batch on the lane axis.
    x = x_ref[...].astype(w1t_ref.dtype)             # in-kernel cast: no extra HBM traffic
    # Layer 1: (H1, F) . (TB, F)^T -> (H1, TB); rhs-transposed contraction on the MXU.
    h1 = jax.lax.dot_general(
        w1t_ref[...], x,
        dimension_numbers=(((1,), (1,)), ((), ())),
        preferred_element_type=jnp.float32)
    h1 = jnp.maximum(h1 + b1_ref[...], 0.0)          # f32 epilogue (v5e-safe); Dropout == id
    # Layer 2: (H2, H1) @ (H1, TB) -> (H2, TB)
    h2 = jnp.dot(w2t_ref[...], h1.astype(w2t_ref.dtype),
                 preferred_element_type=jnp.float32)
    h2 = jnp.maximum(h2 + b2_ref[...], 0.0)
    # Head: (1, H2) @ (H2, TB) -> (1, TB), already lane-dense for the output block.
    out = jnp.dot(w3t_ref[...], h2, preferred_element_type=jnp.float32)
    o_ref[...] = (out + b3_ref[0, 0]).astype(o_ref.dtype)


def regression_model_forward(x, params, *, max_tb=8192, use_bf16_matmul=False):
    """x: (B, input_size) float32. params: PyTorch-layout weights (out,in), biases (out,)."""
    B, F = x.shape
    w1t, w2t, w3t = params["w1"], params["w2"], params["w3"]       # (64,F), (32,64), (1,32)
    b1c = params["b1"].reshape(-1, 1).astype(jnp.float32)          # (64,1) lane-broadcast column
    b2c = params["b2"].reshape(-1, 1).astype(jnp.float32)          # (32,1)
    b3c = params["b3"].reshape(1, 1).astype(jnp.float32)           # scalar -> SMEM
    if use_bf16_matmul:
        # Only the tiny weights are pre-cast; x is cast inside the kernel so no
        # wrapper-side HBM copy of the dominant streamed operand is created.
        w1t = w1t.astype(jnp.bfloat16)
        w2t = w2t.astype(jnp.bfloat16)
    w3t = w3t.astype(jnp.float32)                                  # head stays f32

    H1, H2 = w1t.shape[0], w2t.shape[0]
    padded_b, tb = _choose_tiling(B, max_tb)
    if padded_b != B:
        x = jnp.pad(x, ((0, padded_b - B), (0, 0)))                # only up to the next 128
    n_tiles = padded_b // tb

    if n_tiles == 1:
        dims = ("arbitrary",)                       # single step: no split overhead
    else:
        # Split batch tiles across TensorCores on v7x (2 TCs); no-op on v5e/v6e.
        dims = (pltpu.CORE_PARALLEL,)

    flops = 2 * padded_b * (F * H1 + H1 * H2 + H2)
    bytes_accessed = (
        padded_b * F * x.dtype.itemsize + padded_b * 4
        + sum(int(a.size) * a.dtype.itemsize for a in (w1t, b1c, w2t, b2c, w3t, b3c)))
    cost = pl.CostEstimate(flops=int(flops), transcendentals=0,
                           bytes_accessed=int(bytes_accessed))

    out_row = pl.pallas_call(
        _mlp_kernel,
        out_shape=jax.ShapeDtypeStruct((1, padded_b), jnp.float32),
        grid=(n_tiles,),
        in_specs=[
            # x streamed in (tb, F) row tiles (contiguous HBM reads); weights/biases
            # have constant index maps -> DMA'd once, VMEM-resident for all steps.
            pl.BlockSpec((tb, F), lambda i: (i, 0)),
            pl.BlockSpec(w1t.shape, lambda i: (0, 0)),
            pl.BlockSpec(b1c.shape, lambda i: (0, 0)),
            pl.BlockSpec(w2t.shape, lambda i: (0, 0)),
            pl.BlockSpec(b2c.shape, lambda i: (0, 0)),
            pl.BlockSpec(w3t.shape, lambda i: (0, 0)),
            pl.BlockSpec(b3c.shape, lambda i: (0, 0), memory_space=pltpu.SMEM),
        ],
        out_specs=pl.BlockSpec((1, tb), lambda i: (0, i)),          # lane-dense output slab
        compiler_params=pltpu.CompilerParams(dimension_semantics=dims),
        cost_estimate=cost,
    )(x, w1t, b1c, w2t, b2c, w3t, b3c)
    # (1, padded_B) lane-dense row slab -> (B, 1) column, dropping padded rows.
    return out_row.reshape(padded_b, 1)[:B]


def init_params(key, input_size, hidden_units=(64, 32)):
    """Deterministic init mirroring nn.Linear: weight (out, in), bias (out,)."""
    dims = [input_size, *hidden_units, 1]
    params = {}
    for i in range(len(dims) - 1):
        fan_in, fan_out = dims[i], dims[i + 1]
        key, kw, kb = jax.random.split(key, 3)
        bound = 1.0 / jnp.sqrt(fan_in)
        params[f"w{i + 1}"] = jax.random.uniform(
            kw, (fan_out, fan_in), jnp.float32, -bound, bound)
        params[f"b{i + 1}"] = jax.random.uniform(
            kb, (fan_out,), jnp.float32, -bound, bound)
    return params


def reference_forward(x, params):
    h1 = jnp.maximum(x @ params["w1"].T + params["b1"], 0.0)
    h2 = jnp.maximum(h1 @ params["w2"].T + params["b2"], 0.0)
    return h2 @ params["w3"].T + params["b3"]


if __name__ == "__main__":
    key = jax.random.PRNGKey(0)
    batch, input_size = 1000, 16      # mirrors data.head(1000); tabular feature count
    key, kx, kp = jax.random.split(key, 3)
    x = jax.random.normal(kx, (batch, input_size), jnp.float32)
    params = init_params(kp, input_size, hidden_units=(64, 32))

    ref = reference_forward(x, params)

    # Single-tile f32 path (B=1000 -> one 1024-row tile, one grid step).
    out = jax.block_until_ready(regression_model_forward(x, params))
    assert out.shape == (batch, 1), out.shape
    assert jnp.allclose(out, ref, atol=1e-3, rtol=1e-3), "single-tile f32 mismatch"

    # Multi-tile path (forces 4 tiles of 256 rows; exercises CORE_PARALLEL grid).
    out_mt = jax.block_until_ready(regression_model_forward(x, params, max_tb=256))
    assert out_mt.shape == (batch, 1), out_mt.shape
    assert jnp.allclose(out_mt, ref, atol=1e-3, rtol=1e-3), "multi-tile f32 mismatch"

    # bf16 MXU-operand path (weights pre-cast, x cast in-kernel; f32 accumulation).
    out_bf16 = jax.block_until_ready(
        regression_model_forward(x, params, use_bf16_matmul=True))
    assert out_bf16.shape == (batch, 1), out_bf16.shape
    assert jnp.allclose(out_bf16, ref, atol=5e-2, rtol=5e-2), "bf16 kernel drifted too far"

    print("KERNEL_OK")
</pallas_src>

<mosaic_0001>
module attributes {stable_mosaic.version = 11 : i64} {
  func.func @_mlp_kernel(%arg0: i32, %arg1: memref<1024x16xf32, #tpu.memory_space<vmem>>, %arg2: memref<64x16xf32, #tpu.memory_space<vmem>>, %arg3: memref<64x1xf32, #tpu.memory_space<vmem>>, %arg4: memref<32x64xf32, #tpu.memory_space<vmem>>, %arg5: memref<32x1xf32, #tpu.memory_space<vmem>>, %arg6: memref<1x32xf32, #tpu.memory_space<vmem>>, %arg7: memref<1x1xf32, #tpu.memory_space<smem>>, %arg8: memref<1x1024xf32, #tpu.memory_space<vmem>>) attributes {dimension_semantics = [#tpu.dimension_semantics<arbitrary>], iteration_bounds = array<i64: 1>, scalar_prefetch = 0 : i64, scratch_operands = 0 : i64, tpu.core_type = #tpu.core_type<tc>, window_params = [{transform_indices = @transform_0, window_bounds = array<i64: 1024, 16>}, {pipeline_mode = #tpu.pipeline_mode<synchronous>, transform_indices = @transform_1, window_bounds = array<i64: 64, 16>}, {pipeline_mode = #tpu.pipeline_mode<synchronous>, transform_indices = @transform_2, window_bounds = array<i64: 64, 1>}, {pipeline_mode = #tpu.pipeline_mode<synchronous>, transform_indices = @transform_3, window_bounds = array<i64: 32, 64>}, {pipeline_mode = #tpu.pipeline_mode<synchronous>, transform_indices = @transform_4, window_bounds = array<i64: 32, 1>}, {pipeline_mode = #tpu.pipeline_mode<synchronous>, transform_indices = @transform_5, window_bounds = array<i64: 1, 32>}, {transform_indices = @transform_6, window_bounds = array<i64: 1, 1>}, {transform_indices = @transform_7, window_bounds = array<i64: 1, 1024>}]} {
    %c0 = arith.constant 0 : index
    %c0_0 = arith.constant 0 : index
    %0 = vector.load %arg1[%c0, %c0_0] : memref<1024x16xf32, #tpu.memory_space<vmem>>, vector<1024x16xf32>
    %c0_1 = arith.constant 0 : index
    %c0_2 = arith.constant 0 : index
    %1 = vector.load %arg2[%c0_1, %c0_2] : memref<64x16xf32, #tpu.memory_space<vmem>>, vector<64x16xf32>
    %cst = arith.constant dense<0.000000e+00> : vector<64x1024xf32>
    %2 = tpu.matmul %1, %0, %cst {dimension_numbers = #tpu.dot_dimension_numbers<[1], [1], [0], [0], [0, 0, 1, 0], [], []>} : vector<64x16xf32>, vector<1024x16xf32>, vector<64x1024xf32> -> vector<64x1024xf32>
    %c0_3 = arith.constant 0 : index
    %c0_4 = arith.constant 0 : index
    %3 = vector.load %arg3[%c0_3, %c0_4] : memref<64x1xf32, #tpu.memory_space<vmem>>, vector<64x1xf32>
    %4 = vector.broadcast %3 : vector<64x1xf32> to vector<64x1024xf32>
    %5 = arith.addf %2, %4 : vector<64x1024xf32>
    %cst_5 = arith.constant 0.000000e+00 : f32
    %6 = vector.broadcast %cst_5 : f32 to vector<64x1024xf32>
    %7 = arith.maximumf %5, %6 : vector<64x1024xf32>
    %c0_6 = arith.constant 0 : index
    %c0_7 = arith.constant 0 : index
    %8 = vector.load %arg4[%c0_6, %c0_7] : memref<32x64xf32, #tpu.memory_space<vmem>>, vector<32x64xf32>
    %cst_8 = arith.constant dense<0.000000e+00> : vector<32x1024xf32>
    %9 = tpu.matmul %8, %7, %cst_8 {dimension_numbers = #tpu.dot_dimension_numbers<[1], [0], [0], [1], [0, 0, 1, 1], [], []>} : vector<32x64xf32>, vector<64x1024xf32>, vector<32x1024xf32> -> vector<32x1024xf32>
    %c0_9 = arith.constant 0 : index
    %c0_10 = arith.constant 0 : index
    %10 = vector.load %arg5[%c0_9, %c0_10] : memref<32x1xf32, #tpu.memory_space<vmem>>, vector<32x1xf32>
    %11 = vector.broadcast %10 : vector<32x1xf32> to vector<32x1024xf32>
    %12 = arith.addf %9, %11 : vector<32x1024xf32>
    %cst_11 = arith.constant 0.000000e+00 : f32
    %13 = vector.broadcast %cst_11 : f32 to vector<32x1024xf32>
    %14 = arith.maximumf %12, %13 : vector<32x1024xf32>
    %c0_12 = arith.constant 0 : index
    %c0_13 = arith.constant 0 : index
    %15 = vector.load %arg6[%c0_12, %c0_13] : memref<1x32xf32, #tpu.memory_space<vmem>>, vector<1x32xf32>
    %cst_14 = arith.constant dense<0.000000e+00> : vector<1x1024xf32>
    %16 = tpu.matmul %15, %14, %cst_14 {dimension_numbers = #tpu.dot_dimension_numbers<[1], [0], [0], [1], [0, 0, 1, 1], [], []>} : vector<1x32xf32>, vector<32x1024xf32>, vector<1x1024xf32> -> vector<1x1024xf32>
    %c0_15 = arith.constant 0 : index
    %c0_16 = arith.constant 0 : index
    %17 = memref.load %arg7[%c0_15, %c0_16] : memref<1x1xf32, #tpu.memory_space<smem>>
    %18 = vector.broadcast %17 : f32 to vector<1x1024xf32>
    %19 = arith.addf %16, %18 : vector<1x1024xf32>
    %c0_17 = arith.constant 0 : index
    %c0_18 = arith.constant 0 : index
    %20 = vector.load %arg8[%c0_17, %c0_18] : memref<1x1024xf32, #tpu.memory_space<vmem>>, vector<1x1024xf32>
    tpu.vector_store %arg8[%c0_17, %c0_18], %19 {strides = array<i32>} : memref<1x1024xf32, #tpu.memory_space<vmem>>, vector<1x1024xf32>,
    return
  }
  func.func @transform_0(%arg0: i32) -> (i32, i32) {
    %c0_i32 = arith.constant 0 : i32
    %c0_i32_0 = arith.constant 0 : i32
    return %arg0, %c0_i32 : i32, i32
  }
  func.func @transform_1(%arg0: i32) -> (i32, i32) {
    %c0_i32 = arith.constant 0 : i32
    %c0_i32_0 = arith.constant 0 : i32
    %c0_i32_1 = arith.constant 0 : i32
    return %c0_i32, %c0_i32_0 : i32, i32
  }
  func.func @transform_2(%arg0: i32) -> (i32, i32) {
    %c0_i32 = arith.constant 0 : i32
    %c0_i32_0 = arith.constant 0 : i32
    %c0_i32_1 = arith.constant 0 : i32
    return %c0_i32, %c0_i32_0 : i32, i32
  }
  func.func @transform_3(%arg0: i32) -> (i32, i32) {
    %c0_i32 = arith.constant 0 : i32
    %c0_i32_0 = arith.constant 0 : i32
    %c0_i32_1 = arith.constant 0 : i32
    return %c0_i32, %c0_i32_0 : i32, i32
  }
  func.func @transform_4(%arg0: i32) -> (i32, i32) {
    %c0_i32 = arith.constant 0 : i32
    %c0_i32_0 = arith.constant 0 : i32
    %c0_i32_1 = arith.constant 0 : i32
    return %c0_i32, %c0_i32_0 : i32, i32
  }
  func.func @transform_5(%arg0: i32) -> (i32, i32) {
    %c0_i32 = arith.constant 0 : i32
    %c0_i32_0 = arith.constant 0 : i32
    %c0_i32_1 = arith.constant 0 : i32
    return %c0_i32, %c0_i32_0 : i32, i32
  }
  func.func @transform_6(%arg0: i32) -> (i32, i32) {
    %c0_i32 = arith.constant 0 : i32
    %c0_i32_0 = arith.constant 0 : i32
    %c0_i32_1 = arith.constant 0 : i32
    return %c0_i32, %c0_i32_0 : i32, i32
  }
  func.func @transform_7(%arg0: i32) -> (i32, i32) {
    %c0_i32 = arith.constant 0 : i32
    %c0_i32_0 = arith.constant 0 : i32
    return %c0_i32, %arg0 : i32, i32
  }
}

</mosaic_0001>

<llo_original>
// kernel: tpu_custom_call.1
$region0: #{tpu_custom_call.1}
  #allocation0 [shape = 'u32[]', space=smem, size = 0x4, offset = 0x4, fixed_abs, tag = 'smem constant byte address 0x4 - core index']
  #allocation1 [shape = 'u32[144,128]{1,0:T(1,128)}', space=vmem, size = 0x12000, scoped, tag = 'internal scratch']
  #allocation2 [shape = 'f32[1,1]{1,0:T(1,128)S(6)}', space=smem, size = 0x200, scoped, tag = 'scoped memory for tpu_custom_call.1']
  %s0 = inlined_call_operand.vmem [shape: f32[1024,16], index: 0, kind: input, shape index: {}]
  %s1 = inlined_call_operand.vmem [shape: f32[64,16], index: 1, kind: input, shape index: {}]
  %s2 = inlined_call_operand.vmem [shape: f32[64,1], index: 2, kind: input, shape index: {}]
  %s3 = inlined_call_operand.vmem [shape: f32[32,64], index: 3, kind: input, shape index: {}]
  %s4 = inlined_call_operand.vmem [shape: f32[32,1], index: 4, kind: input, shape index: {}]
  %s5 = inlined_call_operand.vmem [shape: f32[1,32], index: 5, kind: input, shape index: {}]
  %s6 = inlined_call_operand.<no memory space> [shape: f32[1,1], index: 6, kind: input, shape index: {}]
  %s7 = inlined_call_operand.hbm [shape: f32[1,1024], index: 7, kind: output, shape index: {}]
  %s8 = sld [smem:[#allocation0]]
  $region38: #{tpu_custom_call.1} parent=0
    _
  %s10 = ssub.s32 1, %s8
  %s11 = scalar_select 0, %s10, %s8
  %12 = sst [smem:[#allocation2]] %s6
  $region1: #{tpu_custom_call.1} parent=0
    #allocation3 [shape = 'u8[4096]{0}', space=vmem, size = 0x1000, scoped, tag = 'output window, operand 0, single buffered']
    #allocation4 [shape = 's32[1]{0}', space=sflag, size = 0x4, scoped, tag = 'scoped memory for tpu_custom_call.1']
    %13 = vsyncpa [#allocation4], 0
    // Predicated region
    $region2: #{tpu_custom_call.1} parent=1 // pred_check
      _
    $region3: #{tpu_custom_call.1} parent=1 // pred_check_branch
      %15 = sbr.rel (0) target = $region5
    $region4: #{tpu_custom_call.1} parent=1 // pred_region
      _
    $region5: #{tpu_custom_call.1} parent=1 // pred_fallthru
      _
    // Predicated region
    $region6: #{tpu_custom_call.1} parent=1 // pred_check
      _
    $region7: #{tpu_custom_call.1} parent=1 // pred_check_branch
      %17 = sbr.rel (0) target = $region9
    $region8: #{tpu_custom_call.1} parent=1 // pred_region
      _
    $region9: #{tpu_custom_call.1} parent=1 // pred_fallthru
      _
    // Predicated region
    $region10: #{tpu_custom_call.1} parent=1 // pred_check
      _
    $region11: #{tpu_custom_call.1} parent=1 // pred_check_branch
      %19 = sbr.rel (0) target = $region13
    $region12: #{tpu_custom_call.1} parent=1 // pred_region
      _
    $region13: #{tpu_custom_call.1} parent=1 // pred_fallthru
      _
    // Predicated region
    $region14: #{tpu_custom_call.1} parent=1 // pred_check
      _
    $region15: #{tpu_custom_call.1} parent=1 // pred_check_branch
      %21 = sbr.rel (0) target = $region17
    $region16: #{tpu_custom_call.1} parent=1 // pred_region
      _
    $region17: #{tpu_custom_call.1} parent=1 // pred_fallthru
      _
    // Predicated region
    $region18: #{tpu_custom_call.1} parent=1 // pred_check
      _
    $region19: #{tpu_custom_call.1} parent=1 // pred_check_branch
      %23 = sbr.rel (0) target = $region21
    $region20: #{tpu_custom_call.1} parent=1 // pred_region
      _
    $region21: #{tpu_custom_call.1} parent=1 // pred_fallthru
      _
    // Predicated region
    $region22: #{tpu_custom_call.1} parent=1 // pred_check
      _
    $region23: #{tpu_custom_call.1} parent=1 // pred_check_branch
      %25 = sbr.rel (0) target = $region25
    $region24: #{tpu_custom_call.1} parent=1 // pred_region
      _
    $region25: #{tpu_custom_call.1} parent=1 // pred_fallthru
      _
    // Predicated region
    $region26: #{tpu_custom_call.1} parent=1 // pred_check
      _
    $region27: #{tpu_custom_call.1} parent=1 // pred_check_branch
      %27 = sbr.rel (0) target = $region29
    $region28: #{tpu_custom_call.1} parent=1 // pred_region
      _
    $region29: #{tpu_custom_call.1} parent=1 // pred_fallthru
      _
    %v28 = vld [vmem:[%s0] sm:$0xff]
    %v29 = vld [vmem:[%s0 + $0x8] sm:$0xff]
    %v30 = vld [vmem:[%s0 + $0x10] sm:$0xff]
    %v31 = vld [vmem:[%s0 + $0x18] sm:$0xff]
    %v32 = vld [vmem:[%s0 + $0x20] sm:$0xff]
    %v33 = vld [vmem:[%s0 + $0x28] sm:$0xff]
    %v34 = vld [vmem:[%s0 + $0x30] sm:$0xff]
    %v35 = vld [vmem:[%s0 + $0x38] sm:$0xff]
    %v36 = vld [vmem:[%s0 + $0x40] sm:$0xff]
    %v37 = vld [vmem:[%s0 + $0x48] sm:$0xff]
    %v38 = vld [vmem:[%s0 + $0x50] sm:$0xff]
    %v39 = vld [vmem:[%s0 + $0x58] sm:$0xff]
    %v40 = vld [vmem:[%s0 + $0x60] sm:$0xff]
    %v41 = vld [vmem:[%s0 + $0x68] sm:$0xff]
    %v42 = vld [vmem:[%s0 + $0x70] sm:$0xff]
    %v43 = vld [vmem:[%s0 + $0x78] sm:$0xff]
    %v44 = vld [vmem:[%s0 + $0x80] sm:$0xff]
    %v45 = vld [vmem:[%s0 + $0x88] sm:$0xff]
    %v46 = vld [vmem:[%s0 + $0x90] sm:$0xff]
    %v47 = vld [vmem:[%s0 + $0x98] sm:$0xff]
    %v48 = vld [vmem:[%s0 + $0xa0] sm:$0xff]
    %v49 = vld [vmem:[%s0 + $0xa8] sm:$0xff]
    %v50 = vld [vmem:[%s0 + $0xb0] sm:$0xff]
    %v51 = vld [vmem:[%s0 + $0xb8] sm:$0xff]
    %v52 = vld [vmem:[%s0 + $0xc0] sm:$0xff]
    %v53 = vld [vmem:[%s0 + $0xc8] sm:$0xff]
    %v54 = vld [vmem:[%s0 + $0xd0] sm:$0xff]
    %v55 = vld [vmem:[%s0 + $0xd8] sm:$0xff]
    %v56 = vld [vmem:[%s0 + $0xe0] sm:$0xff]
    %v57 = vld [vmem:[%s0 + $0xe8] sm:$0xff]
    %v58 = vld [vmem:[%s0 + $0xf0] sm:$0xff]
    %v59 = vld [vmem:[%s0 + $0xf8] sm:$0xff]
    %v60 = vld [vmem:[%s0 + $0x100] sm:$0xff]
    %v61 = vld [vmem:[%s0 + $0x108] sm:$0xff]
    %v62 = vld [vmem:[%s0 + $0x110] sm:$0xff]
    %v63 = vld [vmem:[%s0 + $0x118] sm:$0xff]
    %v64 = vld [vmem:[%s0 + $0x120] sm:$0xff]
    %v65 = vld [vmem:[%s0 + $0x128] sm:$0xff]
    %v66 = vld [vmem:[%s0 + $0x130] sm:$0xff]
    %v67 = vld [vmem:[%s0 + $0x138] sm:$0xff]
    %v68 = vld [vmem:[%s0 + $0x140] sm:$0xff]
    %v69 = vld [vmem:[%s0 + $0x148] sm:$0xff]
    %v70 = vld [vmem:[%s0 + $0x150] sm:$0xff]
    %v71 = vld [vmem:[%s0 + $0x158] sm:$0xff]
    %v72 = vld [vmem:[%s0 + $0x160] sm:$0xff]
    %v73 = vld [vmem:[%s0 + $0x168] sm:$0xff]
    %v74 = vld [vmem:[%s0 + $0x170] sm:$0xff]
    %v75 = vld [vmem:[%s0 + $0x178] sm:$0xff]
    %v76 = vld [vmem:[%s0 + $0x180] sm:$0xff]
    %v77 = vld [vmem:[%s0 + $0x188] sm:$0xff]
    %v78 = vld [vmem:[%s0 + $0x190] sm:$0xff]
    %v79 = vld [vmem:[%s0 + $0x198] sm:$0xff]
    %v80 = vld [vmem:[%s0 + $0x1a0] sm:$0xff]
    %v81 = vld [vmem:[%s0 + $0x1a8] sm:$0xff]
    %v82 = vld [vmem:[%s0 + $0x1b0] sm:$0xff]
    %v83 = vld [vmem:[%s0 + $0x1b8] sm:$0xff]
    %v84 = vld [vmem:[%s0 + $0x1c0] sm:$0xff]
    %v85 = vld [vmem:[%s0 + $0x1c8] sm:$0xff]
    %v86 = vld [vmem:[%s0 + $0x1d0] sm:$0xff]
    %v87 = vld [vmem:[%s0 + $0x1d8] sm:$0xff]
    %v88 = vld [vmem:[%s0 + $0x1e0] sm:$0xff]
    %v89 = vld [vmem:[%s0 + $0x1e8] sm:$0xff]
    %v90 = vld [vmem:[%s0 + $0x1f0] sm:$0xff]
    %v91 = vld [vmem:[%s0 + $0x1f8] sm:$0xff]
    %v92 = vld [vmem:[%s0 + $0x200] sm:$0xff]
    %v93 = vld [vmem:[%s0 + $0x208] sm:$0xff]
    %v94 = vld [vmem:[%s0 + $0x210] sm:$0xff]
    %v95 = vld [vmem:[%s0 + $0x218] sm:$0xff]
    %v96 = vld [vmem:[%s0 + $0x220] sm:$0xff]
    %v97 = vld [vmem:[%s0 + $0x228] sm:$0xff]
    %v98 = vld [vmem:[%s0 + $0x230] sm:$0xff]
    %v99 = vld [vmem:[%s0 + $0x238] sm:$0xff]
    %v100 = vld [vmem:[%s0 + $0x240] sm:$0xff]
    %v101 = vld [vmem:[%s0 + $0x248] sm:$0xff]
    %v102 = vld [vmem:[%s0 + $0x250] sm:$0xff]
    %v103 = vld [vmem:[%s0 + $0x258] sm:$0xff]
    %v104 = vld [vmem:[%s0 + $0x260] sm:$0xff]
    %v105 = vld [vmem:[%s0 + $0x268] sm:$0xff]
    %v106 = vld [vmem:[%s0 + $0x270] sm:$0xff]
    %v107 = vld [vmem:[%s0 + $0x278] sm:$0xff]
    %v108 = vld [vmem:[%s0 + $0x280] sm:$0xff]
    %v109 = vld [vmem:[%s0 + $0x288] sm:$0xff]
    %v110 = vld [vmem:[%s0 + $0x290] sm:$0xff]
    %v111 = vld [vmem:[%s0 + $0x298] sm:$0xff]
    %v112 = vld [vmem:[%s0 + $0x2a0] sm:$0xff]
    %v113 = vld [vmem:[%s0 + $0x2a8] sm:$0xff]
    %v114 = vld [vmem:[%s0 + $0x2b0] sm:$0xff]
    %v115 = vld [vmem:[%s0 + $0x2b8] sm:$0xff]
    %v116 = vld [vmem:[%s0 + $0x2c0] sm:$0xff]
    %v117 = vld [vmem:[%s0 + $0x2c8] sm:$0xff]
    %v118 = vld [vmem:[%s0 + $0x2d0] sm:$0xff]
    %v119 = vld [vmem:[%s0 + $0x2d8] sm:$0xff]
    %v120 = vld [vmem:[%s0 + $0x2e0] sm:$0xff]
    %v121 = vld [vmem:[%s0 + $0x2e8] sm:$0xff]
    %v122 = vld [vmem:[%s0 + $0x2f0] sm:$0xff]
    %v123 = vld [vmem:[%s0 + $0x2f8] sm:$0xff]
    %v124 = vld [vmem:[%s0 + $0x300] sm:$0xff]
    %v125 = vld [vmem:[%s0 + $0x308] sm:$0xff]
    %v126 = vld [vmem:[%s0 + $0x310] sm:$0xff]
    %v127 = vld [vmem:[%s0 + $0x318] sm:$0xff]
    %v128 = vld [vmem:[%s0 + $0x320] sm:$0xff]
    %v129 = vld [vmem:[%s0 + $0x328] sm:$0xff]
    %v130 = vld [vmem:[%s0 + $0x330] sm:$0xff]
    %v131 = vld [vmem:[%s0 + $0x338] sm:$0xff]
    %v132 = vld [vmem:[%s0 + $0x340] sm:$0xff]
    %v133 = vld [vmem:[%s0 + $0x348] sm:$0xff]
    %v134 = vld [vmem:[%s0 + $0x350] sm:$0xff]
    %v135 = vld [vmem:[%s0 + $0x358] sm:$0xff]
    %v136 = vld [vmem:[%s0 + $0x360] sm:$0xff]
    %v137 = vld [vmem:[%s0 + $0x368] sm:$0xff]
    %v138 = vld [vmem:[%s0 + $0x370] sm:$0xff]
    %v139 = vld [vmem:[%s0 + $0x378] sm:$0xff]
    %v140 = vld [vmem:[%s0 + $0x380] sm:$0xff]
    %v141 = vld [vmem:[%s0 + $0x388] sm:$0xff]
    %v142 = vld [vmem:[%s0 + $0x390] sm:$0xff]
    %v143 = vld [vmem:[%s0 + $0x398] sm:$0xff]
    %v144 = vld [vmem:[%s0 + $0x3a0] sm:$0xff]
    %v145 = vld [vmem:[%s0 + $0x3a8] sm:$0xff]
    %v146 = vld [vmem:[%s0 + $0x3b0] sm:$0xff]
    %v147 = vld [vmem:[%s0 + $0x3b8] sm:$0xff]
    %v148 = vld [vmem:[%s0 + $0x3c0] sm:$0xff]
    %v149 = vld [vmem:[%s0 + $0x3c8] sm:$0xff]
    %v150 = vld [vmem:[%s0 + $0x3d0] sm:$0xff]
    %v151 = vld [vmem:[%s0 + $0x3d8] sm:$0xff]
    %v152 = vld [vmem:[%s0 + $0x3e0] sm:$0xff]
    %v153 = vld [vmem:[%s0 + $0x3e8] sm:$0xff]
    %v154 = vld [vmem:[%s0 + $0x3f0] sm:$0xff]
    %v155 = vld [vmem:[%s0 + $0x3f8] sm:$0xff]
    %v156 = vld [vmem:[%s1] sm:$0xff]
    %v157 = vld [vmem:[%s1 + $0x8] sm:$0xff]
    %v158 = vld [vmem:[%s1 + $0x10] sm:$0xff]
    %v159 = vld [vmem:[%s1 + $0x18] sm:$0xff]
    %v160 = vld [vmem:[%s1 + $0x20] sm:$0xff]
    %v161 = vld [vmem:[%s1 + $0x28] sm:$0xff]
    %v162 = vld [vmem:[%s1 + $0x30] sm:$0xff]
    %v163 = vld [vmem:[%s1 + $0x38] sm:$0xff]
    %v164 = vld [vmem:[%s2] sm:$0xff]
    %v165 = vld [vmem:[%s2 + $0x8] sm:$0xff]
    %v166 = vld [vmem:[%s2 + $0x10] sm:$0xff]
    %v167 = vld [vmem:[%s2 + $0x18] sm:$0xff]
    %v168 = vld [vmem:[%s2 + $0x20] sm:$0xff]
    %v169 = vld [vmem:[%s2 + $0x28] sm:$0xff]
    %v170 = vld [vmem:[%s2 + $0x30] sm:$0xff]
    %v171 = vld [vmem:[%s2 + $0x38] sm:$0xff]
    %173 = vset.pattern.permute.xlu0 0
    %174 = vperm.xlu0 %173, %v164
    %v175 = vpop.permute.xlu0 %174
    %178 = vset.pattern.permute.xlu0 0
    %179 = vperm.xlu0 %178, %v165
    %v180 = vpop.permute.xlu0 %179
    %183 = vset.pattern.permute.xlu0 0
    %184 = vperm.xlu0 %183, %v166
    %v185 = vpop.permute.xlu0 %184
    %188 = vset.pattern.permute.xlu0 0
    %189 = vperm.xlu0 %188, %v167
    %v190 = vpop.permute.xlu0 %189
    %193 = vset.pattern.permute.xlu0 0
    %194 = vperm.xlu0 %193, %v168
    %v195 = vpop.permute.xlu0 %194
    %198 = vset.pattern.permute.xlu0 0
    %199 = vperm.xlu0 %198, %v169
    %v200 = vpop.permute.xlu0 %199
    %203 = vset.pattern.permute.xlu0 0
    %204 = vperm.xlu0 %203, %v170
    %v205 = vpop.permute.xlu0 %204
    %208 = vset.pattern.permute.xlu0 0
    %209 = vperm.xlu0 %208, %v171
    %v210 = vpop.permute.xlu0 %209
    %vm212 = vcmask 130048
    %v214 = vsel %vm212, %v156, 0
    %v217 = vsel %vm212, %v157, 0
    %v220 = vsel %vm212, %v158, 0
    %v223 = vsel %vm212, %v159, 0
    %v226 = vsel %vm212, %v160, 0
    %v229 = vsel %vm212, %v161, 0
    %v232 = vsel %vm212, %v162, 0
    %v235 = vsel %vm212, %v163, 0
    %v238 = vsel %vm212, %v28, 0
    %v241 = vsel %vm212, %v29, 0
    %v244 = vsel %vm212, %v30, 0
    %v247 = vsel %vm212, %v31, 0
    %v250 = vsel %vm212, %v32, 0
    %v253 = vsel %vm212, %v33, 0
    %v256 = vsel %vm212, %v34, 0
    %v259 = vsel %vm212, %v35, 0
    %v262 = vsel %vm212, %v36, 0
    %v265 = vsel %vm212, %v37, 0
    %v268 = vsel %vm212, %v38, 0
    %v271 = vsel %vm212, %v39, 0
    %v274 = vsel %vm212, %v40, 0
    %v277 = vsel %vm212, %v41, 0
    %v280 = vsel %vm212, %v42, 0
    %v283 = vsel %vm212, %v43, 0
    %v286 = vsel %vm212, %v44, 0
    %v289 = vsel %vm212, %v45, 0
    %v292 = vsel %vm212, %v46, 0
    %v295 = vsel %vm212, %v47, 0
    %v298 = vsel %vm212, %v48, 0
    %v301 = vsel %vm212, %v49, 0
    %v304 = vsel %vm212, %v50, 0
    %v307 = vsel %vm212, %v51, 0
    %v310 = vsel %vm212, %v52, 0
    %v313 = vsel %vm212, %v53, 0
    %v316 = vsel %vm212, %v54, 0
    %v319 = vsel %vm212, %v55, 0
    %v322 = vsel %vm212, %v56, 0
    %v325 = vsel %vm212, %v57, 0
    %v328 = vsel %vm212, %v58, 0
    %v331 = vsel %vm212, %v59, 0
    %v334 = vsel %vm212, %v60, 0
    %v337 = vsel %vm212, %v61, 0
    %v340 = vsel %vm212, %v62, 0
    %v343 = vsel %vm212, %v63, 0
    %v346 = vsel %vm212, %v64, 0
    %v349 = vsel %vm212, %v65, 0
    %v352 = vsel %vm212, %v66, 0
    %v355 = vsel %vm212, %v67, 0
    %v358 = vsel %vm212, %v68, 0
    %v361 = vsel %vm212, %v69, 0
    %v364 = vsel %vm212, %v70, 0
    %v367 = vsel %vm212, %v71, 0
    %v370 = vsel %vm212, %v72, 0
    %v373 = vsel %vm212, %v73, 0
    %v376 = vsel %vm212, %v74, 0
    %v379 = vsel %vm212, %v75, 0
    %v382 = vsel %vm212, %v76, 0
    %v385 = vsel %vm212, %v77, 0
    %v388 = vsel %vm212, %v78, 0
    %v391 = vsel %vm212, %v79, 0
    %v394 = vsel %vm212, %v80, 0
    %v397 = vsel %vm212, %v81, 0
    %v400 = vsel %vm212, %v82, 0
    %v403 = vsel %vm212, %v83, 0
    %v406 = vsel %vm212, %v84, 0
    %v409 = vsel %vm212, %v85, 0
    %v412 = vsel %vm212, %v86, 0
    %v415 = vsel %vm212, %v87, 0
    %v418 = vsel %vm212, %v88, 0
    %v421 = vsel %vm212, %v89, 0
    %v424 = vsel %vm212, %v90, 0
    %v427 = vsel %vm212, %v91, 0
    %v430 = vsel %vm212, %v92, 0
    %v433 = vsel %vm212, %v93, 0
    %v436 = vsel %vm212, %v94, 0
    %v439 = vsel %vm212, %v95, 0
    %v442 = vsel %vm212, %v96, 0
    %v445 = vsel %vm212, %v97, 0
    %v448 = vsel %vm212, %v98, 0
    %v451 = vsel %vm212, %v99, 0
    %v454 = vsel %vm212, %v100, 0
    %v457 = vsel %vm212, %v101, 0
    %v460 = vsel %vm212, %v102, 0
    %v463 = vsel %vm212, %v103, 0
    %v466 = vsel %vm212, %v104, 0
    %v469 = vsel %vm212, %v105, 0
    %v472 = vsel %vm212, %v106, 0
    %v475 = vsel %vm212, %v107, 0
    %v478 = vsel %vm212, %v108, 0
    %v481 = vsel %vm212, %v109, 0
    %v484 = vsel %vm212, %v110, 0
    %v487 = vsel %vm212, %v111, 0
    %v490 = vsel %vm212, %v112, 0
    %v493 = vsel %vm212, %v113, 0
    %v496 = vsel %vm212, %v114, 0
    %v499 = vsel %vm212, %v115, 0
    %v502 = vsel %vm212, %v116, 0
    %v505 = vsel %vm212, %v117, 0
    %v508 = vsel %vm212, %v118, 0
    %v511 = vsel %vm212, %v119, 0
    %v514 = vsel %vm212, %v120, 0
    %v517 = vsel %vm212, %v121, 0
    %v520 = vsel %vm212, %v122, 0
    %v523 = vsel %vm212, %v123, 0
    %v526 = vsel %vm212, %v124, 0
    %v529 = vsel %vm212, %v125, 0
    %v532 = vsel %vm212, %v126, 0
    %v535 = vsel %vm212, %v127, 0
    %v538 = vsel %vm212, %v128, 0
    %v541 = vsel %vm212, %v129, 0
    %v544 = vsel %vm212, %v130, 0
    %v547 = vsel %vm212, %v131, 0
    %v550 = vsel %vm212, %v132, 0
    %v553 = vsel %vm212, %v133, 0
    %v556 = vsel %vm212, %v134, 0
    %v559 = vsel %vm212, %v135, 0
    %v562 = vsel %vm212, %v136, 0
    %v565 = vsel %vm212, %v137, 0
    %v568 = vsel %vm212, %v138, 0
    %v571 = vsel %vm212, %v139, 0
    %v574 = vsel %vm212, %v140, 0
    %v577 = vsel %vm212, %v141, 0
    %v580 = vsel %vm212, %v142, 0
    %v583 = vsel %vm212, %v143, 0
    %v586 = vsel %vm212, %v144, 0
    %v589 = vsel %vm212, %v145, 0
    %v592 = vsel %vm212, %v146, 0
    %v595 = vsel %vm212, %v147, 0
    %v598 = vsel %vm212, %v148, 0
    %v601 = vsel %vm212, %v149, 0
    %v604 = vsel %vm212, %v150, 0
    %v607 = vsel %vm212, %v151, 0
    %v610 = vsel %vm212, %v152, 0
    %v613 = vsel %vm212, %v153, 0
    %v616 = vsel %vm212, %v154, 0
    %v619 = vsel %vm212, %v155, 0
    %621 = vmatprep.subr.mxu0 0.0
    %622 = vmatpush1.xpose.msra.mxu0 %v238
    %623 = vmatprep.subr.mxu0 0.0
    %624 = vmatpush1.xpose.msra.mxu0 %v241
    %625 = vmatprep.subr.mxu0 0.0
    %626 = vmatpush1.xpose.msra.mxu0 %v244
    %627 = vmatprep.subr.mxu0 0.0
    %628 = vmatpush1.xpose.msra.mxu0 %v247
    %629 = vmatprep.subr.mxu0 0.0
    %630 = vmatpush1.xpose.msra.mxu0 %v250
    %631 = vmatprep.subr.mxu0 0.0
    %632 = vmatpush1.xpose.msra.mxu0 %v253
    %633 = vmatprep.subr.mxu0 0.0
    %634 = vmatpush1.xpose.msra.mxu0 %v256
    %635 = vmatprep.subr.mxu0 0.0
    %636 = vmatpush1.xpose.msra.mxu0 %v259
    %637 = vmatprep.subr.mxu0 0.0
    %638 = vmatpush1.xpose.msra.mxu0 %v262
    %639 = vmatprep.subr.mxu0 0.0
    %640 = vmatpush1.xpose.msra.mxu0 %v265
    %641 = vmatprep.subr.mxu0 0.0
    %642 = vmatpush1.xpose.msra.mxu0 %v268
    %643 = vmatprep.subr.mxu0 0.0
    %644 = vmatpush1.xpose.msra.mxu0 %v271
    %645 = vmatprep.subr.mxu0 0.0
    %646 = vmatpush1.xpose.msra.mxu0 %v274
    %647 = vmatprep.subr.mxu0 0.0
    %648 = vmatpush1.xpose.msra.mxu0 %v277
    %649 = vmatprep.subr.mxu0 0.0
    %650 = vmatpush1.xpose.msra.mxu0 %v280
    %651 = vmatprep.subr.mxu0 0.0
    %652 = vmatpush1.xpose.msra.mxu0 %v283
    %653 = vmatprep.subr.mxu0 0.0
    %654 = vmatpush1.xpose.msra.mxu0 %v286
    %655 = vmatprep.subr.mxu0 0.0
    %656 = vmatpush1.xpose.msra.mxu0 %v289
    %657 = vmatprep.subr.mxu0 0.0
    %658 = vmatpush1.xpose.msra.mxu0 %v292
    %659 = vmatprep.subr.mxu0 0.0
    %660 = vmatpush1.xpose.msra.mxu0 %v295
    %661 = vmatprep.subr.mxu0 0.0
    %662 = vmatpush1.xpose.msra.mxu0 %v298
    %663 = vmatprep.subr.mxu0 0.0
    %664 = vmatpush1.xpose.msra.mxu0 %v301
    %665 = vmatprep.subr.mxu0 0.0
    %666 = vmatpush1.xpose.msra.mxu0 %v304
    %667 = vmatprep.subr.mxu0 0.0
    %668 = vmatpush1.xpose.msra.mxu0 %v307
    %669 = vmatprep.subr.mxu0 0.0
    %670 = vmatpush1.xpose.msra.mxu0 %v310
    %671 = vmatprep.subr.mxu0 0.0
    %672 = vmatpush1.xpose.msra.mxu0 %v313
    %673 = vmatprep.subr.mxu0 0.0
    %674 = vmatpush1.xpose.msra.mxu0 %v316
    %675 = vmatprep.subr.mxu0 0.0
    %676 = vmatpush1.xpose.msra.mxu0 %v319
    %677 = vmatprep.subr.mxu0 0.0
    %678 = vmatpush1.xpose.msra.mxu0 %v322
    %679 = vmatprep.subr.mxu0 0.0
    %680 = vmatpush1.xpose.msra.mxu0 %v325
    %681 = vmatprep.subr.mxu0 0.0
    %682 = vmatpush1.xpose.msra.mxu0 %v328
    %683 = vmatprep.subr.mxu0 0.0
    %684 = vmatpush1.xpose.msra.mxu0 %v331
    %685 = vmatprep.mubr.f32.mxu0 0.0
    %686 = vmatmul.mubr.f32.gmra.mrb[0].mxu0 %v214
    %v687 = vpop.f32.mrb[0].mxu0
    %v688 = vadd.f32 %v175, %v687
    %v689 = vpop.f32.mrb[0].mxu0
    %v690 = vadd.f32 %v175, %v689
    %691 = vmatprep.mubr.f32.mxu0 0.0
    %692 = vmatmul.mubr.f32.gmra.mrb[0].mxu0 %v217
    %v693 = vpop.f32.mrb[0].mxu0
    %v694 = vadd.f32 %v180, %v693
    %v695 = vpop.f32.mrb[0].mxu0
    %v696 = vadd.f32 %v180, %v695
    %697 = vmatprep.mubr.f32.mxu0 0.0
    %698 = vmatmul.mubr.f32.gmra.mrb[0].mxu0 %v220
    %v699 = vpop.f32.mrb[0].mxu0
    %v700 = vadd.f32 %v185, %v699
    %v701 = vpop.f32.mrb[0].mxu0
    %v702 = vadd.f32 %v185, %v701
    %703 = vmatprep.mubr.f32.mxu0 0.0
    %704 = vmatmul.mubr.f32.gmra.mrb[0].mxu0 %v223
    %v705 = vpop.f32.mrb[0].mxu0
    %v706 = vadd.f32 %v190, %v705
    %v707 = vpop.f32.mrb[0].mxu0
    %v708 = vadd.f32 %v190, %v707
    %709 = vmatprep.mubr.f32.mxu0 0.0
    %710 = vmatmul.mubr.f32.gmra.mrb[0].mxu0 %v226
    %v711 = vpop.f32.mrb[0].mxu0
    %v712 = vadd.f32 %v195, %v711
    %v713 = vpop.f32.mrb[0].mxu0
    %v714 = vadd.f32 %v195, %v713
    %715 = vmatprep.mubr.f32.mxu0 0.0
    %716 = vmatmul.mubr.f32.gmra.mrb[0].mxu0 %v229
    %v717 = vpop.f32.mrb[0].mxu0
    %v718 = vadd.f32 %v200, %v717
    %v719 = vpop.f32.mrb[0].mxu0
    %v720 = vadd.f32 %v200, %v719
    %721 = vmatprep.mubr.f32.mxu0 0.0
    %722 = vmatmul.mubr.f32.gmra.mrb[0].mxu0 %v232
    %v723 = vpop.f32.mrb[0].mxu0
    %v724 = vadd.f32 %v205, %v723
    %v725 = vpop.f32.mrb[0].mxu0
    %v726 = vadd.f32 %v205, %v725
    %727 = vmatprep.mubr.f32.mxu0 0.0
    %728 = vmatmul.mubr.f32.gmra.mrb[0].mxu0 %v235
    %v729 = vpop.f32.mrb[0].mxu0
    %v730 = vadd.f32 %v210, %v729
    %v731 = vpop.f32.mrb[0].mxu0
    %v732 = vadd.f32 %v210, %v731
    %733 = vdwg.mxu0
    %734 = vmatprep.subr.mxu0 0.0
    %735 = vmatpush1.xpose.msra.mxu0 %v334
    %736 = vmatprep.subr.mxu0 0.0
    %737 = vmatpush1.xpose.msra.mxu0 %v337
    %738 = vmatprep.subr.mxu0 0.0
    %739 = vmatpush1.xpose.msra.mxu0 %v340
    %740 = vmatprep.subr.mxu0 0.0
    %741 = vmatpush1.xpose.msra.mxu0 %v343
    %742 = vmatprep.subr.mxu0 0.0
    %743 = vmatpush1.xpose.msra.mxu0 %v346
    %744 = vmatprep.subr.mxu0 0.0
    %745 = vmatpush1.xpose.msra.mxu0 %v349
    %746 = vmatprep.subr.mxu0 0.0
    %747 = vmatpush1.xpose.msra.mxu0 %v352
    %748 = vmatprep.subr.mxu0 0.0
    %749 = vmatpush1.xpose.msra.mxu0 %v355
    %750 = vmatprep.subr.mxu0 0.0
    %751 = vmatpush1.xpose.msra.mxu0 %v358
    %752 = vmatprep.subr.mxu0 0.0
    %753 = vmatpush1.xpose.msra.mxu0 %v361
    %754 = vmatprep.subr.mxu0 0.0
    %755 = vmatpush1.xpose.msra.mxu0 %v364
    %756 = vmatprep.subr.mxu0 0.0
    %757 = vmatpush1.xpose.msra.mxu0 %v367
    %758 = vmatprep.subr.mxu0 0.0
    %759 = vmatpush1.xpose.msra.mxu0 %v370
    %760 = vmatprep.subr.mxu0 0.0
    %761 = vmatpush1.xpose.msra.mxu0 %v373
    %762 = vmatprep.subr.mxu0 0.0
    %763 = vmatpush1.xpose.msra.mxu0 %v376
    %764 = vmatprep.subr.mxu0 0.0
    %765 = vmatpush1.xpose.msra.mxu0 %v379
    %766 = vmatprep.subr.mxu0 0.0
    %767 = vmatpush1.xpose.msra.mxu0 %v382
    %768 = vmatprep.subr.mxu0 0.0
    %769 = vmatpush1.xpose.msra.mxu0 %v385
    %770 = vmatprep.subr.mxu0 0.0
    %771 = vmatpush1.xpose.msra.mxu0 %v388
    %772 = vmatprep.subr.mxu0 0.0
    %773 = vmatpush1.xpose.msra.mxu0 %v391
    %774 = vmatprep.subr.mxu0 0.0
    %775 = vmatpush1.xpose.msra.mxu0 %v394
    %776 = vmatprep.subr.mxu0 0.0
    %777 = vmatpush1.xpose.msra.mxu0 %v397
    %778 = vmatprep.subr.mxu0 0.0
    %779 = vmatpush1.xpose.msra.mxu0 %v400
    %780 = vmatprep.subr.mxu0 0.0
    %781 = vmatpush1.xpose.msra.mxu0 %v403
    %782 = vmatprep.subr.mxu0 0.0
    %783 = vmatpush1.xpose.msra.mxu0 %v406
    %784 = vmatprep.subr.mxu0 0.0
    %785 = vmatpush1.xpose.msra.mxu0 %v409
    %786 = vmatprep.subr.mxu0 0.0
    %787 = vmatpush1.xpose.msra.mxu0 %v412
    %788 = vmatprep.subr.mxu0 0.0
    %789 = vmatpush1.xpose.msra.mxu0 %v415
    %790 = vmatprep.subr.mxu0 0.0
    %791 = vmatpush1.xpose.msra.mxu0 %v418
    %792 = vmatprep.subr.mxu0 0.0
    %793 = vmatpush1.xpose.msra.mxu0 %v421
    %794 = vmatprep.subr.mxu0 0.0
    %795 = vmatpush1.xpose.msra.mxu0 %v424
    %796 = vmatprep.subr.mxu0 0.0
    %797 = vmatpush1.xpose.msra.mxu0 %v427
    %798 = vmatprep.mubr.f32.mxu0 0.0
    %799 = vmatmul.mubr.f32.gmra.mrb[0].mxu0 %v214
    %v800 = vpop.f32.mrb[0].mxu0
    %v801 = vadd.f32 %v175, %v800
    %v802 = vpop.f32.mrb[0].mxu0
    %v803 = vadd.f32 %v175, %v802
    %804 = vmatprep.mubr.f32.mxu0 0.0
    %805 = vmatmul.mubr.f32.gmra.mrb[0].mxu0 %v217
    %v806 = vpop.f32.mrb[0].mxu0
    %v807 = vadd.f32 %v180, %v806
    %v808 = vpop.f32.mrb[0].mxu0
    %v809 = vadd.f32 %v180, %v808
    %810 = vmatprep.mubr.f32.mxu0 0.0
    %811 = vmatmul.mubr.f32.gmra.mrb[0].mxu0 %v220
    %v812 = vpop.f32.mrb[0].mxu0
    %v813 = vadd.f32 %v185, %v812
    %v814 = vpop.f32.mrb[0].mxu0
    %v815 = vadd.f32 %v185, %v814
    %816 = vmatprep.mubr.f32.mxu0 0.0
    %817 = vmatmul.mubr.f32.gmra.mrb[0].mxu0 %v223
    %v818 = vpop.f32.mrb[0].mxu0
    %v819 = vadd.f32 %v190, %v818
    %v820 = vpop.f32.mrb[0].mxu0
    %v821 = vadd.f32 %v190, %v820
    %822 = vmatprep.mubr.f32.mxu0 0.0
    %823 = vmatmul.mubr.f32.gmra.mrb[0].mxu0 %v226
    %v824 = vpop.f32.mrb[0].mxu0
    %v825 = vadd.f32 %v195, %v824
    %v826 = vpop.f32.mrb[0].mxu0
    %v827 = vadd.f32 %v195, %v826
    %828 = vmatprep.mubr.f32.mxu0 0.0
    %829 = vmatmul.mubr.f32.gmra.mrb[0].mxu0 %v229
    %v830 = vpop.f32.mrb[0].mxu0
    %v831 = vadd.f32 %v200, %v830
    %v832 = vpop.f32.mrb[0].mxu0
    %v833 = vadd.f32 %v200, %v832
    %834 = vmatprep.mubr.f32.mxu0 0.0
    %835 = vmatmul.mubr.f32.gmra.mrb[0].mxu0 %v232
    %v836 = vpop.f32.mrb[0].mxu0
    %v837 = vadd.f32 %v205, %v836
    %v838 = vpop.f32.mrb[0].mxu0
    %v839 = vadd.f32 %v205, %v838
    %840 = vmatprep.mubr.f32.mxu0 0.0
    %841 = vmatmul.mubr.f32.gmra.mrb[0].mxu0 %v235
    %v842 = vpop.f32.mrb[0].mxu0
    %v843 = vadd.f32 %v210, %v842
    %v844 = vpop.f32.mrb[0].mxu0
    %v845 = vadd.f32 %v210, %v844
    %846 = vdwg.mxu0
    %847 = vmatprep.subr.mxu0 0.0
    %848 = vmatpush1.xpose.msra.mxu0 %v430
    %849 = vmatprep.subr.mxu0 0.0
    %850 = vmatpush1.xpose.msra.mxu0 %v433
    %851 = vmatprep.subr.mxu0 0.0
    %852 = vmatpush1.xpose.msra.mxu0 %v436
    %853 = vmatprep.subr.mxu0 0.0
    %854 = vmatpush1.xpose.msra.mxu0 %v439
    %855 = vmatprep.subr.mxu0 0.0
    %856 = vmatpush1.xpose.msra.mxu0 %v442
    %857 = vmatprep.subr.mxu0 0.0
    %858 = vmatpush1.xpose.msra.mxu0 %v445
    %859 = vmatprep.subr.mxu0 0.0
    %860 = vmatpush1.xpose.msra.mxu0 %v448
    %861 = vmatprep.subr.mxu0 0.0
    %862 = vmatpush1.xpose.msra.mxu0 %v451
    %863 = vmatprep.subr.mxu0 0.0
    %864 = vmatpush1.xpose.msra.mxu0 %v454
    %865 = vmatprep.subr.mxu0 0.0
    %866 = vmatpush1.xpose.msra.mxu0 %v457
    %867 = vmatprep.subr.mxu0 0.0
    %868 = vmatpush1.xpose.msra.mxu0 %v460
    %869 = vmatprep.subr.mxu0 0.0
    %870 = vmatpush1.xpose.msra.mxu0 %v463
    %871 = vmatprep.subr.mxu0 0.0
    %872 = vmatpush1.xpose.msra.mxu0 %v466
    %873 = vmatprep.subr.mxu0 0.0
    %874 = vmatpush1.xpose.msra.mxu0 %v469
    %875 = vmatprep.subr.mxu0 0.0
    %876 = vmatpush1.xpose.msra.mxu0 %v472
    %877 = vmatprep.subr.mxu0 0.0
    %878 = vmatpush1.xpose.msra.mxu0 %v475
    %879 = vmatprep.subr.mxu0 0.0
    %880 = vmatpush1.xpose.msra.mxu0 %v478
    %881 = vmatprep.subr.mxu0 0.0
    %882 = vmatpush1.xpose.msra.mxu0 %v481
    %883 = vmatprep.subr.mxu0 0.0
    %884 = vmatpush1.xpose.msra.mxu0 %v484
    %885 = vmatprep.subr.mxu0 0.0
    %886 = vmatpush1.xpose.msra.mxu0 %v487
    %887 = vmatprep.subr.mxu0 0.0
    %888 = vmatpush1.xpose.msra.mxu0 %v490
    %889 = vmatprep.subr.mxu0 0.0
    %890 = vmatpush1.xpose.msra.mxu0 %v493
    %891 = vmatprep.subr.mxu0 0.0
    %892 = vmatpush1.xpose.msra.mxu0 %v496
    %893 = vmatprep.subr.mxu0 0.0
    %894 = vmatpush1.xpose.msra.mxu0 %v499
    %895 = vmatprep.subr.mxu0 0.0
    %896 = vmatpush1.xpose.msra.mxu0 %v502
    %897 = vmatprep.subr.mxu0 0.0
    %898 = vmatpush1.xpose.msra.mxu0 %v505
    %899 = vmatprep.subr.mxu0 0.0
    %900 = vmatpush1.xpose.msra.mxu0 %v508
    %901 = vmatprep.subr.mxu0 0.0
    %902 = vmatpush1.xpose.msra.mxu0 %v511
    %903 = vmatprep.subr.mxu0 0.0
    %904 = vmatpush1.xpose.msra.mxu0 %v514
    %905 = vmatprep.subr.mxu0 0.0
    %906 = vmatpush1.xpose.msra.mxu0 %v517
    %907 = vmatprep.subr.mxu0 0.0
    %908 = vmatpush1.xpose.msra.mxu0 %v520
    %909 = vmatprep.subr.mxu0 0.0
    %910 = vmatpush1.xpose.msra.mxu0 %v523
    %911 = vmatprep.mubr.f32.mxu0 0.0
    %912 = vmatmul.mubr.f32.gmra.mrb[0].mxu0 %v214
    %v913 = vpop.f32.mrb[0].mxu0
    %v914 = vadd.f32 %v175, %v913
    %v915 = vpop.f32.mrb[0].mxu0
    %v916 = vadd.f32 %v175, %v915
    %917 = vmatprep.mubr.f32.mxu0 0.0
    %918 = vmatmul.mubr.f32.gmra.mrb[0].mxu0 %v217
    %v919 = vpop.f32.mrb[0].mxu0
    %v920 = vadd.f32 %v180, %v919
    %v921 = vpop.f32.mrb[0].mxu0
    %v922 = vadd.f32 %v180, %v921
    %923 = vmatprep.mubr.f32.mxu0 0.0
    %924 = vmatmul.mubr.f32.gmra.mrb[0].mxu0 %v220
    %v925 = vpop.f32.mrb[0].mxu0
    %v926 = vadd.f32 %v185, %v925
    %v927 = vpop.f32.mrb[0].mxu0
    %v928 = vadd.f32 %v185, %v927
    %929 = vmatprep.mubr.f32.mxu0 0.0
    %930 = vmatmul.mubr.f32.gmra.mrb[0].mxu0 %v223
    %v931 = vpop.f32.mrb[0].mxu0
    %v932 = vadd.f32 %v190, %v931
    %v933 = vpop.f32.mrb[0].mxu0
    %v934 = vadd.f32 %v190, %v933
    %935 = vmatprep.mubr.f32.mxu0 0.0
    %936 = vmatmul.mubr.f32.gmra.mrb[0].mxu0 %v226
    %v937 = vpop.f32.mrb[0].mxu0
    %v938 = vadd.f32 %v195, %v937
    %v939 = vpop.f32.mrb[0].mxu0
    %v940 = vadd.f32 %v195, %v939
    %941 = vmatprep.mubr.f32.mxu0 0.0
    %942 = vmatmul.mubr.f32.gmra.mrb[0].mxu0 %v229
    %v943 = vpop.f32.mrb[0].mxu0
    %v944 = vadd.f32 %v200, %v943
    %v945 = vpop.f32.mrb[0].mxu0
    %v946 = vadd.f32 %v200, %v945
    %947 = vmatprep.mubr.f32.mxu0 0.0
    %948 = vmatmul.mubr.f32.gmra.mrb[0].mxu0 %v232
    %v949 = vpop.f32.mrb[0].mxu0
    %v950 = vadd.f32 %v205, %v949
    %v951 = vpop.f32.mrb[0].mxu0
    %v952 = vadd.f32 %v205, %v951
    %953 = vmatprep.mubr.f32.mxu0 0.0
    %954 = vmatmul.mubr.f32.gmra.mrb[0].mxu0 %v235
    %v955 = vpop.f32.mrb[0].mxu0
    %v956 = vadd.f32 %v210, %v955
    %v957 = vpop.f32.mrb[0].mxu0
    %v958 = vadd.f32 %v210, %v957
    %959 = vdwg.mxu0
    %960 = vmatprep.subr.mxu0 0.0
    %961 = vmatpush1.xpose.msra.mxu0 %v526
    %962 = vmatprep.subr.mxu0 0.0
    %963 = vmatpush1.xpose.msra.mxu0 %v529
    %964 = vmatprep.subr.mxu0 0.0
    %965 = vmatpush1.xpose.msra.mxu0 %v532
    %966 = vmatprep.subr.mxu0 0.0
    %967 = vmatpush1.xpose.msra.mxu0 %v535
    %968 = vmatprep.subr.mxu0 0.0
    %969 = vmatpush1.xpose.msra.mxu0 %v538
    %970 = vmatprep.subr.mxu0 0.0
    %971 = vmatpush1.xpose.msra.mxu0 %v541
    %972 = vmatprep.subr.mxu0 0.0
    %973 = vmatpush1.xpose.msra.mxu0 %v544
    %974 = vmatprep.subr.mxu0 0.0
    %975 = vmatpush1.xpose.msra.mxu0 %v547
    %976 = vmatprep.subr.mxu0 0.0
    %977 = vmatpush1.xpose.msra.mxu0 %v550
    %978 = vmatprep.subr.mxu0 0.0
    %979 = vmatpush1.xpose.msra.mxu0 %v553
    %980 = vmatprep.subr.mxu0 0.0
    %981 = vmatpush1.xpose.msra.mxu0 %v556
    %982 = vmatprep.subr.mxu0 0.0
    %983 = vmatpush1.xpose.msra.mxu0 %v559
    %984 = vmatprep.subr.mxu0 0.0
    %985 = vmatpush1.xpose.msra.mxu0 %v562
    %986 = vmatprep.subr.mxu0 0.0
    %987 = vmatpush1.xpose.msra.mxu0 %v565
    %988 = vmatprep.subr.mxu0 0.0
    %989 = vmatpush1.xpose.msra.mxu0 %v568
    %990 = vmatprep.subr.mxu0 0.0
    %991 = vmatpush1.xpose.msra.mxu0 %v571
    %992 = vmatprep.subr.mxu0 0.0
    %993 = vmatpush1.xpose.msra.mxu0 %v574
    %994 = vmatprep.subr.mxu0 0.0
    %995 = vmatpush1.xpose.msra.mxu0 %v577
    %996 = vmatprep.subr.mxu0 0.0
    %997 = vmatpush1.xpose.msra.mxu0 %v580
    %998 = vmatprep.subr.mxu0 0.0
    %999 = vmatpush1.xpose.msra.mxu0 %v583
    %1000 = vmatprep.subr.mxu0 0.0
    %1001 = vmatpush1.xpose.msra.mxu0 %v586
    %1002 = vmatprep.subr.mxu0 0.0
    %1003 = vmatpush1.xpose.msra.mxu0 %v589
    %1004 = vmatprep.subr.mxu0 0.0
    %1005 = vmatpush1.xpose.msra.mxu0 %v592
    %1006 = vmatprep.subr.mxu0 0.0
    %1007 = vmatpush1.xpose.msra.mxu0 %v595
    %1008 = vmatprep.subr.mxu0 0.0
    %1009 = vmatpush1.xpose.msra.mxu0 %v598
    %1010 = vmatprep.subr.mxu0 0.0
    %1011 = vmatpush1.xpose.msra.mxu0 %v601
    %1012 = vmatprep.subr.mxu0 0.0
    %1013 = vmatpush1.xpose.msra.mxu0 %v604
    %1014 = vmatprep.subr.mxu0 0.0
    %1015 = vmatpush1.xpose.msra.mxu0 %v607
    %1016 = vmatprep.subr.mxu0 0.0
    %1017 = vmatpush1.xpose.msra.mxu0 %v610
    %1018 = vmatprep.subr.mxu0 0.0
    %1019 = vmatpush1.xpose.msra.mxu0 %v613
    %1020 = vmatprep.subr.mxu0 0.0
    %1021 = vmatpush1.xpose.msra.mxu0 %v616
    %1022 = vmatprep.subr.mxu0 0.0
    %1023 = vmatpush1.xpose.msra.mxu0 %v619
    %1024 = vmatprep.mubr.f32.mxu0 0.0
    %1025 = vmatmul.mubr.f32.gmra.mrb[0].mxu0 %v214
    %v1026 = vpop.f32.mrb[0].mxu0
    %v1027 = vadd.f32 %v175, %v1026
    %v1028 = vpop.f32.mrb[0].mxu0
    %v1029 = vadd.f32 %v175, %v1028
    %1030 = vmatprep.mubr.f32.mxu0 0.0
    %1031 = vmatmul.mubr.f32.gmra.mrb[0].mxu0 %v217
    %v1032 = vpop.f32.mrb[0].mxu0
    %v1033 = vadd.f32 %v180, %v1032
    %v1034 = vpop.f32.mrb[0].mxu0
    %v1035 = vadd.f32 %v180, %v1034
    %1036 = vmatprep.mubr.f32.mxu0 0.0
    %1037 = vmatmul.mubr.f32.gmra.mrb[0].mxu0 %v220
    %v1038 = vpop.f32.mrb[0].mxu0
    %v1039 = vadd.f32 %v185, %v1038
    %v1040 = vpop.f32.mrb[0].mxu0
    %v1041 = vadd.f32 %v185, %v1040
    %1042 = vmatprep.mubr.f32.mxu0 0.0
    %1043 = vmatmul.mubr.f32.gmra.mrb[0].mxu0 %v223
    %v1044 = vpop.f32.mrb[0].mxu0
    %v1045 = vadd.f32 %v190, %v1044
    %v1046 = vpop.f32.mrb[0].mxu0
    %v1047 = vadd.f32 %v190, %v1046
    %1048 = vmatprep.mubr.f32.mxu0 0.0
    %1049 = vmatmul.mubr.f32.gmra.mrb[0].mxu0 %v226
    %v1050 = vpop.f32.mrb[0].mxu0
    %v1051 = vadd.f32 %v195, %v1050
    %v1052 = vpop.f32.mrb[0].mxu0
    %v1053 = vadd.f32 %v195, %v1052
    %1054 = vmatprep.mubr.f32.mxu0 0.0
    %1055 = vmatmul.mubr.f32.gmra.mrb[0].mxu0 %v229
    %v1056 = vpop.f32.mrb[0].mxu0
    %v1057 = vadd.f32 %v200, %v1056
    %v1058 = vpop.f32.mrb[0].mxu0
    %v1059 = vadd.f32 %v200, %v1058
    %1060 = vmatprep.mubr.f32.mxu0 0.0
    %1061 = vmatmul.mubr.f32.gmra.mrb[0].mxu0 %v232
    %v1062 = vpop.f32.mrb[0].mxu0
    %v1063 = vadd.f32 %v205, %v1062
    %v1064 = vpop.f32.mrb[0].mxu0
    %v1065 = vadd.f32 %v205, %v1064
    %1066 = vmatprep.mubr.f32.mxu0 0.0
    %1067 = vmatmul.mubr.f32.gmra.mrb[0].mxu0 %v235
    %v1068 = vpop.f32.mrb[0].mxu0
    %v1069 = vadd.f32 %v210, %v1068
    %v1070 = vpop.f32.mrb[0].mxu0
    %v1071 = vadd.f32 %v210, %v1070
    %1072 = vdwg.mxu0
    %v1073 = vmax.f32 %v688, 0.0
    %v1074 = vmax.f32 %v690, 0.0
    %v1075 = vmax.f32 %v801, 0.0
    %v1076 = vmax.f32 %v803, 0.0
    %v1077 = vmax.f32 %v914, 0.0
    %v1078 = vmax.f32 %v916, 0.0
    %v1079 = vmax.f32 %v1027, 0.0
    %v1080 = vmax.f32 %v1029, 0.0
    %v1081 = vmax.f32 %v694, 0.0
    %v1082 = vmax.f32 %v696, 0.0
    %v1083 = vmax.f32 %v807, 0.0
    %v1084 = vmax.f32 %v809, 0.0
    %v1085 = vmax.f32 %v920, 0.0
    %v1086 = vmax.f32 %v922, 0.0
    %v1087 = vmax.f32 %v1033, 0.0
    %v1088 = vmax.f32 %v1035, 0.0
    %v1089 = vmax.f32 %v700, 0.0
    %v1090 = vmax.f32 %v702, 0.0
    %v1091 = vmax.f32 %v813, 0.0
    %v1092 = vmax.f32 %v815, 0.0
    %v1093 = vmax.f32 %v926, 0.0
    %v1094 = vmax.f32 %v928, 0.0
    %v1095 = vmax.f32 %v1039, 0.0
    %v1096 = vmax.f32 %v1041, 0.0
    %v1097 = vmax.f32 %v706, 0.0
    %v1098 = vmax.f32 %v708, 0.0
    %v1099 = vmax.f32 %v819, 0.0
    %v1100 = vmax.f32 %v821, 0.0
    %v1101 = vmax.f32 %v932, 0.0
    %v1102 = vmax.f32 %v934, 0.0
    %v1103 = vmax.f32 %v1045, 0.0
    %v1104 = vmax.f32 %v1047, 0.0
    %v1105 = vmax.f32 %v712, 0.0
    %v1106 = vmax.f32 %v714, 0.0
    %v1107 = vmax.f32 %v825, 0.0
    %v1108 = vmax.f32 %v827, 0.0
    %v1109 = vmax.f32 %v938, 0.0
    %v1110 = vmax.f32 %v940, 0.0
    %v1111 = vmax.f32 %v1051, 0.0
    %v1112 = vmax.f32 %v1053, 0.0
    %v1113 = vmax.f32 %v718, 0.0
    %v1114 = vmax.f32 %v720, 0.0
    %v1115 = vmax.f32 %v831, 0.0
    %v1116 = vmax.f32 %v833, 0.0
    %v1117 = vmax.f32 %v944, 0.0
    %v1118 = vmax.f32 %v946, 0.0
    %v1119 = vmax.f32 %v1057, 0.0
    %v1120 = vmax.f32 %v1059, 0.0
    %v1121 = vmax.f32 %v724, 0.0
    %v1122 = vmax.f32 %v726, 0.0
    %v1123 = vmax.f32 %v837, 0.0
    %v1124 = vmax.f32 %v839, 0.0
    %v1125 = vmax.f32 %v950, 0.0
    %v1126 = vmax.f32 %v952, 0.0
    %v1127 = vmax.f32 %v1063, 0.0
    %v1128 = vmax.f32 %v1065, 0.0
    %v1129 = vmax.f32 %v730, 0.0
    %v1130 = vmax.f32 %v732, 0.0
    %v1131 = vmax.f32 %v843, 0.0
    %v1132 = vmax.f32 %v845, 0.0
    %v1133 = vmax.f32 %v956, 0.0
    %v1134 = vmax.f32 %v958, 0.0
    %v1135 = vmax.f32 %v1069, 0.0
    %v1136 = vmax.f32 %v1071, 0.0
    %v1137 = vld [vmem:[%s3] sm:$0xff]
    %v1138 = vld [vmem:[%s3 + $0x8] sm:$0xff]
    %v1139 = vld [vmem:[%s3 + $0x10] sm:$0xff]
    %v1140 = vld [vmem:[%s3 + $0x18] sm:$0xff]
    %v1141 = vld [vmem:[%s4] sm:$0xff]
    %v1142 = vld [vmem:[%s4 + $0x8] sm:$0xff]
    %v1143 = vld [vmem:[%s4 + $0x10] sm:$0xff]
    %v1144 = vld [vmem:[%s4 + $0x18] sm:$0xff]
    %1146 = vset.pattern.permute.xlu0 0
    %1147 = vperm.xlu0 %1146, %v1141
    %v1148 = vpop.permute.xlu0 %1147
    %1151 = vset.pattern.permute.xlu0 0
    %1152 = vperm.xlu0 %1151, %v1142
    %v1153 = vpop.permute.xlu0 %1152
    %1156 = vset.pattern.permute.xlu0 0
    %1157 = vperm.xlu0 %1156, %v1143
    %v1158 = vpop.permute.xlu0 %1157
    %1161 = vset.pattern.permute.xlu0 0
    %1162 = vperm.xlu0 %1161, %v1144
    %v1163 = vpop.permute.xlu0 %1162
    %vm1165 = vcmask 523264
    %v1167 = vsel %vm1165, %v1137, 0
    %v1170 = vsel %vm1165, %v1138, 0
    %v1173 = vsel %vm1165, %v1139, 0
    %v1176 = vsel %vm1165, %v1140, 0
    %1178 = vmatprep.subr.mxu0 %v1074
    %1179 = vmatpush1.msra.mxu0 %v1073
    %1180 = vmatprep.subr.mxu0 %v1082
    %1181 = vmatpush1.msra.mxu0 %v1081
    %1182 = vmatprep.subr.mxu0 %v1090
    %1183 = vmatpush1.msra.mxu0 %v1089
    %1184 = vmatprep.subr.mxu0 %v1098
    %1185 = vmatpush1.msra.mxu0 %v1097
    %1186 = vmatprep.subr.mxu0 %v1106
    %1187 = vmatpush1.msra.mxu0 %v1105
    %1188 = vmatprep.subr.mxu0 %v1114
    %1189 = vmatpush1.msra.mxu0 %v1113
    %1190 = vmatprep.subr.mxu0 %v1122
    %1191 = vmatpush1.msra.mxu0 %v1121
    %1192 = vmatprep.subr.mxu0 %v1130
    %1193 = vmatpush1.msra.mxu0 %v1129
    %1194 = vmatprep.subr.mxu0 0.0
    %1195 = vmatpush1.msra.mxu0 0.0
    %1196 = vmatprep.subr.mxu0 0.0
    %1197 = vmatpush1.msra.mxu0 0.0
    %1198 = vmatprep.subr.mxu0 0.0
    %1199 = vmatpush1.msra.mxu0 0.0
    %1200 = vmatprep.subr.mxu0 0.0
    %1201 = vmatpush1.msra.mxu0 0.0
    %1202 = vmatprep.subr.mxu0 0.0
    %1203 = vmatpush1.msra.mxu0 0.0
    %1204 = vmatprep.subr.mxu0 0.0
    %1205 = vmatpush1.msra.mxu0 0.0
    %1206 = vmatprep.subr.mxu0 0.0
    %1207 = vmatpush1.msra.mxu0 0.0
    %1208 = vmatprep.subr.mxu0 0.0
    %1209 = vmatpush1.msra.mxu0 0.0
    %1210 = vmatprep.subr.mxu0 0.0
    %1211 = vmatpush1.msra.mxu0 0.0
    %1212 = vmatprep.subr.mxu0 0.0
    %1213 = vmatpush1.msra.mxu0 0.0
    %1214 = vmatprep.subr.mxu0 0.0
    %1215 = vmatpush1.msra.mxu0 0.0
    %1216 = vmatprep.subr.mxu0 0.0
    %1217 = vmatpush1.msra.mxu0 0.0
    %1218 = vmatprep.subr.mxu0 0.0
    %1219 = vmatpush1.msra.mxu0 0.0
    %1220 = vmatprep.subr.mxu0 0.0
    %1221 = vmatpush1.msra.mxu0 0.0
    %1222 = vmatprep.subr.mxu0 0.0
    %1223 = vmatpush1.msra.mxu0 0.0
    %1224 = vmatprep.subr.mxu0 0.0
    %1225 = vmatpush1.msra.mxu0 0.0
    %1226 = vmatprep.subr.mxu0 0.0
    %1227 = vmatpush1.msra.mxu0 0.0
    %1228 = vmatprep.subr.mxu0 0.0
    %1229 = vmatpush1.msra.mxu0 0.0
    %1230 = vmatprep.subr.mxu0 0.0
    %1231 = vmatpush1.msra.mxu0 0.0
    %1232 = vmatprep.subr.mxu0 0.0
    %1233 = vmatpush1.msra.mxu0 0.0
    %1234 = vmatprep.subr.mxu0 0.0
    %1235 = vmatpush1.msra.mxu0 0.0
    %1236 = vmatprep.subr.mxu0 0.0
    %1237 = vmatpush1.msra.mxu0 0.0
    %1238 = vmatprep.subr.mxu0 0.0
    %1239 = vmatpush1.msra.mxu0 0.0
    %1240 = vmatprep.subr.mxu0 0.0
    %1241 = vmatpush1.msra.mxu0 0.0
    %1242 = vmatprep.mubr.f32.mxu0 0.0
    %1243 = vmatmul.mubr.f32.gmra.mrb[0].mxu0 %v1167
    %v1244 = vpop.f32.mrb[0].mxu0
    %v1245 = vadd.f32 %v1148, %v1244
    %v1246 = vpop.f32.mrb[0].mxu0
    %v1247 = vadd.f32 %v1148, %v1246
    %1248 = vmatprep.mubr.f32.mxu0 0.0
    %1249 = vmatmul.mubr.f32.gmra.mrb[0].mxu0 %v1170
    %v1250 = vpop.f32.mrb[0].mxu0
    %v1251 = vadd.f32 %v1153, %v1250
    %v1252 = vpop.f32.mrb[0].mxu0
    %v1253 = vadd.f32 %v1153, %v1252
    %1254 = vmatprep.mubr.f32.mxu0 0.0
    %1255 = vmatmul.mubr.f32.gmra.mrb[0].mxu0 %v1173
    %v1256 = vpop.f32.mrb[0].mxu0
    %v1257 = vadd.f32 %v1158, %v1256
    %v1258 = vpop.f32.mrb[0].mxu0
    %v1259 = vadd.f32 %v1158, %v1258
    %1260 = vmatprep.mubr.f32.mxu0 0.0
    %1261 = vmatmul.mubr.f32.gmra.mrb[0].mxu0 %v1176
    %v1262 = vpop.f32.mrb[0].mxu0
    %v1263 = vadd.f32 %v1163, %v1262
    %v1264 = vpop.f32.mrb[0].mxu0
    %v1265 = vadd.f32 %v1163, %v1264
    %1266 = vdwg.mxu0
    %1267 = vmatprep.subr.mxu0 %v1076
    %1268 = vmatpush1.msra.mxu0 %v1075
    %1269 = vmatprep.subr.mxu0 %v1084
    %1270 = vmatpush1.msra.mxu0 %v1083
    %1271 = vmatprep.subr.mxu0 %v1092
    %1272 = vmatpush1.msra.mxu0 %v1091
    %1273 = vmatprep.subr.mxu0 %v1100
    %1274 = vmatpush1.msra.mxu0 %v1099
    %1275 = vmatprep.subr.mxu0 %v1108
    %1276 = vmatpush1.msra.mxu0 %v1107
    %1277 = vmatprep.subr.mxu0 %v1116
    %1278 = vmatpush1.msra.mxu0 %v1115
    %1279 = vmatprep.subr.mxu0 %v1124
    %1280 = vmatpush1.msra.mxu0 %v1123
    %1281 = vmatprep.subr.mxu0 %v1132
    %1282 = vmatpush1.msra.mxu0 %v1131
    %1283 = vmatprep.subr.mxu0 0.0
    %1284 = vmatpush1.msra.mxu0 0.0
    %1285 = vmatprep.subr.mxu0 0.0
    %1286 = vmatpush1.msra.mxu0 0.0
    %1287 = vmatprep.subr.mxu0 0.0
    %1288 = vmatpush1.msra.mxu0 0.0
    %1289 = vmatprep.subr.mxu0 0.0
    %1290 = vmatpush1.msra.mxu0 0.0
    %1291 = vmatprep.subr.mxu0 0.0
    %1292 = vmatpush1.msra.mxu0 0.0
    %1293 = vmatprep.subr.mxu0 0.0
    %1294 = vmatpush1.msra.mxu0 0.0
    %1295 = vmatprep.subr.mxu0 0.0
    %1296 = vmatpush1.msra.mxu0 0.0
    %1297 = vmatprep.subr.mxu0 0.0
    %1298 = vmatpush1.msra.mxu0 0.0
    %1299 = vmatprep.subr.mxu0 0.0
    %1300 = vmatpush1.msra.mxu0 0.0
    %1301 = vmatprep.subr.mxu0 0.0
    %1302 = vmatpush1.msra.mxu0 0.0
    %1303 = vmatprep.subr.mxu0 0.0
    %1304 = vmatpush1.msra.mxu0 0.0
    %1305 = vmatprep.subr.mxu0 0.0
    %1306 = vmatpush1.msra.mxu0 0.0
    %1307 = vmatprep.subr.mxu0 0.0
    %1308 = vmatpush1.msra.mxu0 0.0
    %1309 = vmatprep.subr.mxu0 0.0
    %1310 = vmatpush1.msra.mxu0 0.0
    %1311 = vmatprep.subr.mxu0 0.0
    %1312 = vmatpush1.msra.mxu0 0.0
    %1313 = vmatprep.subr.mxu0 0.0
    %1314 = vmatpush1.msra.mxu0 0.0
    %1315 = vmatprep.subr.mxu0 0.0
    %1316 = vmatpush1.msra.mxu0 0.0
    %1317 = vmatprep.subr.mxu0 0.0
    %1318 = vmatpush1.msra.mxu0 0.0
    %1319 = vmatprep.subr.mxu0 0.0
    %1320 = vmatpush1.msra.mxu0 0.0
    %1321 = vmatprep.subr.mxu0 0.0
    %1322 = vmatpush1.msra.mxu0 0.0
    %1323 = vmatprep.subr.mxu0 0.0
    %1324 = vmatpush1.msra.mxu0 0.0
    %1325 = vmatprep.subr.mxu0 0.0
    %1326 = vmatpush1.msra.mxu0 0.0
    %1327 = vmatprep.subr.mxu0 0.0
    %1328 = vmatpush1.msra.mxu0 0.0
    %1329 = vmatprep.subr.mxu0 0.0
    %1330 = vmatpush1.msra.mxu0 0.0
    %1331 = vmatprep.mubr.f32.mxu0 0.0
    %1332 = vmatmul.mubr.f32.gmra.mrb[0].mxu0 %v1167
    %v1333 = vpop.f32.mrb[0].mxu0
    %v1334 = vadd.f32 %v1148, %v1333
    %v1335 = vpop.f32.mrb[0].mxu0
    %v1336 = vadd.f32 %v1148, %v1335
    %1337 = vmatprep.mubr.f32.mxu0 0.0
    %1338 = vmatmul.mubr.f32.gmra.mrb[0].mxu0 %v1170
    %v1339 = vpop.f32.mrb[0].mxu0
    %v1340 = vadd.f32 %v1153, %v1339
    %v1341 = vpop.f32.mrb[0].mxu0
    %v1342 = vadd.f32 %v1153, %v1341
    %1343 = vmatprep.mubr.f32.mxu0 0.0
    %1344 = vmatmul.mubr.f32.gmra.mrb[0].mxu0 %v1173
    %v1345 = vpop.f32.mrb[0].mxu0
    %v1346 = vadd.f32 %v1158, %v1345
    %v1347 = vpop.f32.mrb[0].mxu0
    %v1348 = vadd.f32 %v1158, %v1347
    %1349 = vmatprep.mubr.f32.mxu0 0.0
    %1350 = vmatmul.mubr.f32.gmra.mrb[0].mxu0 %v1176
    %v1351 = vpop.f32.mrb[0].mxu0
    %v1352 = vadd.f32 %v1163, %v1351
    %v1353 = vpop.f32.mrb[0].mxu0
    %v1354 = vadd.f32 %v1163, %v1353
    %1355 = vdwg.mxu0
    %1356 = vmatprep.subr.mxu0 %v1078
    %1357 = vmatpush1.msra.mxu0 %v1077
    %1358 = vmatprep.subr.mxu0 %v1086
    %1359 = vmatpush1.msra.mxu0 %v1085
    %1360 = vmatprep.subr.mxu0 %v1094
    %1361 = vmatpush1.msra.mxu0 %v1093
    %1362 = vmatprep.subr.mxu0 %v1102
    %1363 = vmatpush1.msra.mxu0 %v1101
    %1364 = vmatprep.subr.mxu0 %v1110
    %1365 = vmatpush1.msra.mxu0 %v1109
    %1366 = vmatprep.subr.mxu0 %v1118
    %1367 = vmatpush1.msra.mxu0 %v1117
    %1368 = vmatprep.subr.mxu0 %v1126
    %1369 = vmatpush1.msra.mxu0 %v1125
    %1370 = vmatprep.subr.mxu0 %v1134
    %1371 = vmatpush1.msra.mxu0 %v1133
    %1372 = vmatprep.subr.mxu0 0.0
    %1373 = vmatpush1.msra.mxu0 0.0
    %1374 = vmatprep.subr.mxu0 0.0
    %1375 = vmatpush1.msra.mxu0 0.0
    %1376 = vmatprep.subr.mxu0 0.0
    %1377 = vmatpush1.msra.mxu0 0.0
    %1378 = vmatprep.subr.mxu0 0.0
    %1379 = vmatpush1.msra.mxu0 0.0
    %1380 = vmatprep.subr.mxu0 0.0
    %1381 = vmatpush1.msra.mxu0 0.0
    %1382 = vmatprep.subr.mxu0 0.0
    %1383 = vmatpush1.msra.mxu0 0.0
    %1384 = vmatprep.subr.mxu0 0.0
    %1385 = vmatpush1.msra.mxu0 0.0
    %1386 = vmatprep.subr.mxu0 0.0
    %1387 = vmatpush1.msra.mxu0 0.0
    %1388 = vmatprep.subr.mxu0 0.0
    %1389 = vmatpush1.msra.mxu0 0.0
    %1390 = vmatprep.subr.mxu0 0.0
    %1391 = vmatpush1.msra.mxu0 0.0
    %1392 = vmatprep.subr.mxu0 0.0
    %1393 = vmatpush1.msra.mxu0 0.0
    %1394 = vmatprep.subr.mxu0 0.0
    %1395 = vmatpush1.msra.mxu0 0.0
    %1396 = vmatprep.subr.mxu0 0.0
    %1397 = vmatpush1.msra.mxu0 0.0
    %1398 = vmatprep.subr.mxu0 0.0
    %1399 = vmatpush1.msra.mxu0 0.0
    %1400 = vmatprep.subr.mxu0 0.0
    %1401 = vmatpush1.msra.mxu0 0.0
    %1402 = vmatprep.subr.mxu0 0.0
    %1403 = vmatpush1.msra.mxu0 0.0
    %1404 = vmatprep.subr.mxu0 0.0
    %1405 = vmatpush1.msra.mxu0 0.0
    %1406 = vmatprep.subr.mxu0 0.0
    %1407 = vmatpush1.msra.mxu0 0.0
    %1408 = vmatprep.subr.mxu0 0.0
    %1409 = vmatpush1.msra.mxu0 0.0
    %1410 = vmatprep.subr.mxu0 0.0
    %1411 = vmatpush1.msra.mxu0 0.0
    %1412 = vmatprep.subr.mxu0 0.0
    %1413 = vmatpush1.msra.mxu0 0.0
    %1414 = vmatprep.subr.mxu0 0.0
    %1415 = vmatpush1.msra.mxu0 0.0
    %1416 = vmatprep.subr.mxu0 0.0
    %1417 = vmatpush1.msra.mxu0 0.0
    %1418 = vmatprep.subr.mxu0 0.0
    %1419 = vmatpush1.msra.mxu0 0.0
    %1420 = vmatprep.mubr.f32.mxu0 0.0
    %1421 = vmatmul.mubr.f32.gmra.mrb[0].mxu0 %v1167
    %v1422 = vpop.f32.mrb[0].mxu0
    %v1423 = vadd.f32 %v1148, %v1422
    %v1424 = vpop.f32.mrb[0].mxu0
    %v1425 = vadd.f32 %v1148, %v1424
    %1426 = vmatprep.mubr.f32.mxu0 0.0
    %1427 = vmatmul.mubr.f32.gmra.mrb[0].mxu0 %v1170
    %v1428 = vpop.f32.mrb[0].mxu0
    %v1429 = vadd.f32 %v1153, %v1428
    %v1430 = vpop.f32.mrb[0].mxu0
    %v1431 = vadd.f32 %v1153, %v1430
    %1432 = vmatprep.mubr.f32.mxu0 0.0
    %1433 = vmatmul.mubr.f32.gmra.mrb[0].mxu0 %v1173
    %v1434 = vpop.f32.mrb[0].mxu0
    %v1435 = vadd.f32 %v1158, %v1434
    %v1436 = vpop.f32.mrb[0].mxu0
    %v1437 = vadd.f32 %v1158, %v1436
    %1438 = vmatprep.mubr.f32.mxu0 0.0
    %1439 = vmatmul.mubr.f32.gmra.mrb[0].mxu0 %v1176
    %v1440 = vpop.f32.mrb[0].mxu0
    %v1441 = vadd.f32 %v1163, %v1440
    %v1442 = vpop.f32.mrb[0].mxu0
    %v1443 = vadd.f32 %v1163, %v1442
    %1444 = vdwg.mxu0
    %1445 = vmatprep.subr.mxu0 %v1080
    %1446 = vmatpush1.msra.mxu0 %v1079
    %1447 = vmatprep.subr.mxu0 %v1088
    %1448 = vmatpush1.msra.mxu0 %v1087
    %1449 = vmatprep.subr.mxu0 %v1096
    %1450 = vmatpush1.msra.mxu0 %v1095
    %1451 = vmatprep.subr.mxu0 %v1104
    %1452 = vmatpush1.msra.mxu0 %v1103
    %1453 = vmatprep.subr.mxu0 %v1112
    %1454 = vmatpush1.msra.mxu0 %v1111
    %1455 = vmatprep.subr.mxu0 %v1120
    %1456 = vmatpush1.msra.mxu0 %v1119
    %1457 = vmatprep.subr.mxu0 %v1128
    %1458 = vmatpush1.msra.mxu0 %v1127
    %1459 = vmatprep.subr.mxu0 %v1136
    %1460 = vmatpush1.msra.mxu0 %v1135
    %1461 = vmatprep.subr.mxu0 0.0
    %1462 = vmatpush1.msra.mxu0 0.0
    %1463 = vmatprep.subr.mxu0 0.0
    %1464 = vmatpush1.msra.mxu0 0.0
    %1465 = vmatprep.subr.mxu0 0.0
    %1466 = vmatpush1.msra.mxu0 0.0
    %1467 = vmatprep.subr.mxu0 0.0
    %1468 = vmatpush1.msra.mxu0 0.0
    %1469 = vmatprep.subr.mxu0 0.0
    %1470 = vmatpush1.msra.mxu0 0.0
    %1471 = vmatprep.subr.mxu0 0.0
    %1472 = vmatpush1.msra.mxu0 0.0
    %1473 = vmatprep.subr.mxu0 0.0
    %1474 = vmatpush1.msra.mxu0 0.0
    %1475 = vmatprep.subr.mxu0 0.0
    %1476 = vmatpush1.msra.mxu0 0.0
    %1477 = vmatprep.subr.mxu0 0.0
    %1478 = vmatpush1.msra.mxu0 0.0
    %1479 = vmatprep.subr.mxu0 0.0
    %1480 = vmatpush1.msra.mxu0 0.0
    %1481 = vmatprep.subr.mxu0 0.0
    %1482 = vmatpush1.msra.mxu0 0.0
    %1483 = vmatprep.subr.mxu0 0.0
    %1484 = vmatpush1.msra.mxu0 0.0
    %1485 = vmatprep.subr.mxu0 0.0
    %1486 = vmatpush1.msra.mxu0 0.0
    %1487 = vmatprep.subr.mxu0 0.0
    %1488 = vmatpush1.msra.mxu0 0.0
    %1489 = vmatprep.subr.mxu0 0.0
    %1490 = vmatpush1.msra.mxu0 0.0
    %1491 = vmatprep.subr.mxu0 0.0
    %1492 = vmatpush1.msra.mxu0 0.0
    %1493 = vmatprep.subr.mxu0 0.0
    %1494 = vmatpush1.msra.mxu0 0.0
    %1495 = vmatprep.subr.mxu0 0.0
    %1496 = vmatpush1.msra.mxu0 0.0
    %1497 = vmatprep.subr.mxu0 0.0
    %1498 = vmatpush1.msra.mxu0 0.0
    %1499 = vmatprep.subr.mxu0 0.0
    %1500 = vmatpush1.msra.mxu0 0.0
    %1501 = vmatprep.subr.mxu0 0.0
    %1502 = vmatpush1.msra.mxu0 0.0
    %1503 = vmatprep.subr.mxu0 0.0
    %1504 = vmatpush1.msra.mxu0 0.0
    %1505 = vmatprep.subr.mxu0 0.0
    %1506 = vmatpush1.msra.mxu0 0.0
    %1507 = vmatprep.subr.mxu0 0.0
    %1508 = vmatpush1.msra.mxu0 0.0
    %1509 = vmatprep.mubr.f32.mxu0 0.0
    %1510 = vmatmul.mubr.f32.gmra.mrb[0].mxu0 %v1167
    %v1511 = vpop.f32.mrb[0].mxu0
    %v1512 = vadd.f32 %v1148, %v1511
    %v1513 = vpop.f32.mrb[0].mxu0
    %v1514 = vadd.f32 %v1148, %v1513
    %1515 = vmatprep.mubr.f32.mxu0 0.0
    %1516 = vmatmul.mubr.f32.gmra.mrb[0].mxu0 %v1170
    %v1517 = vpop.f32.mrb[0].mxu0
    %v1518 = vadd.f32 %v1153, %v1517
    %v1519 = vpop.f32.mrb[0].mxu0
    %v1520 = vadd.f32 %v1153, %v1519
    %1521 = vmatprep.mubr.f32.mxu0 0.0
    %1522 = vmatmul.mubr.f32.gmra.mrb[0].mxu0 %v1173
    %v1523 = vpop.f32.mrb[0].mxu0
    %v1524 = vadd.f32 %v1158, %v1523
    %v1525 = vpop.f32.mrb[0].mxu0
    %v1526 = vadd.f32 %v1158, %v1525
    %1527 = vmatprep.mubr.f32.mxu0 0.0
    %1528 = vmatmul.mubr.f32.gmra.mrb[0].mxu0 %v1176
    %v1529 = vpop.f32.mrb[0].mxu0
    %v1530 = vadd.f32 %v1163, %v1529
    %v1531 = vpop.f32.mrb[0].mxu0
    %v1532 = vadd.f32 %v1163, %v1531
    %1533 = vdwg.mxu0
    %v1534 = vmax.f32 %v1245, 0.0
    %v1535 = vmax.f32 %v1247, 0.0
    %v1536 = vmax.f32 %v1334, 0.0
    %v1537 = vmax.f32 %v1336, 0.0
    %v1538 = vmax.f32 %v1423, 0.0
    %v1539 = vmax.f32 %v1425, 0.0
    %v1540 = vmax.f32 %v1512, 0.0
    %v1541 = vmax.f32 %v1514, 0.0
    %v1542 = vmax.f32 %v1251, 0.0
    %v1543 = vmax.f32 %v1253, 0.0
    %v1544 = vmax.f32 %v1340, 0.0
    %v1545 = vmax.f32 %v1342, 0.0
    %v1546 = vmax.f32 %v1429, 0.0
    %v1547 = vmax.f32 %v1431, 0.0
    %v1548 = vmax.f32 %v1518, 0.0
    %v1549 = vmax.f32 %v1520, 0.0
    %v1550 = vmax.f32 %v1257, 0.0
    %v1551 = vmax.f32 %v1259, 0.0
    %v1552 = vmax.f32 %v1346, 0.0
    %v1553 = vmax.f32 %v1348, 0.0
    %v1554 = vmax.f32 %v1435, 0.0
    %v1555 = vmax.f32 %v1437, 0.0
    %v1556 = vmax.f32 %v1524, 0.0
    %v1557 = vmax.f32 %v1526, 0.0
    %v1558 = vmax.f32 %v1263, 0.0
    %v1559 = vmax.f32 %v1265, 0.0
    %v1560 = vmax.f32 %v1352, 0.0
    %v1561 = vmax.f32 %v1354, 0.0
    %v1562 = vmax.f32 %v1441, 0.0
    %v1563 = vmax.f32 %v1443, 0.0
    %v1564 = vmax.f32 %v1530, 0.0
    %v1565 = vmax.f32 %v1532, 0.0
    %v1566 = vld [vmem:[%s5] sm:$0x1]
    %s1567 = sld [smem:[#allocation2]]
    %v1568 = vstv %s1567
    %vm1569 = vcmask 261120
    %v1571 = vsel %vm1569, %v1566, 0
    %1573 = vmatprep.subr.mxu0 %v1535
    %1574 = vmatpush1.msra.mxu0 %v1534
    %1575 = vmatprep.subr.mxu0 %v1543
    %1576 = vmatpush1.msra.mxu0 %v1542
    %1577 = vmatprep.subr.mxu0 %v1551
    %1578 = vmatpush1.msra.mxu0 %v1550
    %1579 = vmatprep.subr.mxu0 %v1559
    %1580 = vmatpush1.msra.mxu0 %v1558
    %1581 = vmatprep.subr.mxu0 0.0
    %1582 = vmatpush1.msra.mxu0 0.0
    %1583 = vmatprep.subr.mxu0 0.0
    %1584 = vmatpush1.msra.mxu0 0.0
    %1585 = vmatprep.subr.mxu0 0.0
    %1586 = vmatpush1.msra.mxu0 0.0
    %1587 = vmatprep.subr.mxu0 0.0
    %1588 = vmatpush1.msra.mxu0 0.0
    %1589 = vmatprep.subr.mxu0 0.0
    %1590 = vmatpush1.msra.mxu0 0.0
    %1591 = vmatprep.subr.mxu0 0.0
    %1592 = vmatpush1.msra.mxu0 0.0
    %1593 = vmatprep.subr.mxu0 0.0
    %1594 = vmatpush1.msra.mxu0 0.0
    %1595 = vmatprep.subr.mxu0 0.0
    %1596 = vmatpush1.msra.mxu0 0.0
    %1597 = vmatprep.subr.mxu0 0.0
    %1598 = vmatpush1.msra.mxu0 0.0
    %1599 = vmatprep.subr.mxu0 0.0
    %1600 = vmatpush1.msra.mxu0 0.0
    %1601 = vmatprep.subr.mxu0 0.0
    %1602 = vmatpush1.msra.mxu0 0.0
    %1603 = vmatprep.subr.mxu0 0.0
    %1604 = vmatpush1.msra.mxu0 0.0
    %1605 = vmatprep.subr.mxu0 0.0
    %1606 = vmatpush1.msra.mxu0 0.0
    %1607 = vmatprep.subr.mxu0 0.0
    %1608 = vmatpush1.msra.mxu0 0.0
    %1609 = vmatprep.subr.mxu0 0.0
    %1610 = vmatpush1.msra.mxu0 0.0
    %1611 = vmatprep.subr.mxu0 0.0
    %1612 = vmatpush1.msra.mxu0 0.0
    %1613 = vmatprep.subr.mxu0 0.0
    %1614 = vmatpush1.msra.mxu0 0.0
    %1615 = vmatprep.subr.mxu0 0.0
    %1616 = vmatpush1.msra.mxu0 0.0
    %1617 = vmatprep.subr.mxu0 0.0
    %1618 = vmatpush1.msra.mxu0 0.0
    %1619 = vmatprep.subr.mxu0 0.0
    %1620 = vmatpush1.msra.mxu0 0.0
    %1621 = vmatprep.subr.mxu0 0.0
    %1622 = vmatpush1.msra.mxu0 0.0
    %1623 = vmatprep.subr.mxu0 0.0
    %1624 = vmatpush1.msra.mxu0 0.0
    %1625 = vmatprep.subr.mxu0 0.0
    %1626 = vmatpush1.msra.mxu0 0.0
    %1627 = vmatprep.subr.mxu0 0.0
    %1628 = vmatpush1.msra.mxu0 0.0
    %1629 = vmatprep.subr.mxu0 0.0
    %1630 = vmatpush1.msra.mxu0 0.0
    %1631 = vmatprep.subr.mxu0 0.0
    %1632 = vmatpush1.msra.mxu0 0.0
    %1633 = vmatprep.subr.mxu0 0.0
    %1634 = vmatpush1.msra.mxu0 0.0
    %1635 = vmatprep.subr.mxu0 0.0
    %1636 = vmatpush1.msra.mxu0 0.0
    %1637 = vmatprep.mubr.f32.mxu0 0.0
    %1638 = vmatmul.mubr.f32.gmra.mrb[0].mxu0 %v1571
    %v1639 = vpop.f32.mrb[0].mxu0
    %v1640 = vadd.f32 %v1568, %v1639
    %v1641 = vpop.f32.mrb[0].mxu0
    %v1642 = vadd.f32 %v1568, %v1641
    %1643 = vdwg.mxu0
    %1644 = vmatprep.subr.mxu0 %v1537
    %1645 = vmatpush1.msra.mxu0 %v1536
    %1646 = vmatprep.subr.mxu0 %v1545
    %1647 = vmatpush1.msra.mxu0 %v1544
    %1648 = vmatprep.subr.mxu0 %v1553
    %1649 = vmatpush1.msra.mxu0 %v1552
    %1650 = vmatprep.subr.mxu0 %v1561
    %1651 = vmatpush1.msra.mxu0 %v1560
    %1652 = vmatprep.subr.mxu0 0.0
    %1653 = vmatpush1.msra.mxu0 0.0
    %1654 = vmatprep.subr.mxu0 0.0
    %1655 = vmatpush1.msra.mxu0 0.0
    %1656 = vmatprep.subr.mxu0 0.0
    %1657 = vmatpush1.msra.mxu0 0.0
    %1658 = vmatprep.subr.mxu0 0.0
    %1659 = vmatpush1.msra.mxu0 0.0
    %1660 = vmatprep.subr.mxu0 0.0
    %1661 = vmatpush1.msra.mxu0 0.0
    %1662 = vmatprep.subr.mxu0 0.0
    %1663 = vmatpush1.msra.mxu0 0.0
    %1664 = vmatprep.subr.mxu0 0.0
    %1665 = vmatpush1.msra.mxu0 0.0
    %1666 = vmatprep.subr.mxu0 0.0
    %1667 = vmatpush1.msra.mxu0 0.0
    %1668 = vmatprep.subr.mxu0 0.0
    %1669 = vmatpush1.msra.mxu0 0.0
    %1670 = vmatprep.subr.mxu0 0.0
    %1671 = vmatpush1.msra.mxu0 0.0
    %1672 = vmatprep.subr.mxu0 0.0
    %1673 = vmatpush1.msra.mxu0 0.0
    %1674 = vmatprep.subr.mxu0 0.0
    %1675 = vmatpush1.msra.mxu0 0.0
    %1676 = vmatprep.subr.mxu0 0.0
    %1677 = vmatpush1.msra.mxu0 0.0
    %1678 = vmatprep.subr.mxu0 0.0
    %1679 = vmatpush1.msra.mxu0 0.0
    %1680 = vmatprep.subr.mxu0 0.0
    %1681 = vmatpush1.msra.mxu0 0.0
    %1682 = vmatprep.subr.mxu0 0.0
    %1683 = vmatpush1.msra.mxu0 0.0
    %1684 = vmatprep.subr.mxu0 0.0
    %1685 = vmatpush1.msra.mxu0 0.0
    %1686 = vmatprep.subr.mxu0 0.0
    %1687 = vmatpush1.msra.mxu0 0.0
    %1688 = vmatprep.subr.mxu0 0.0
    %1689 = vmatpush1.msra.mxu0 0.0
    %1690 = vmatprep.subr.mxu0 0.0
    %1691 = vmatpush1.msra.mxu0 0.0
    %1692 = vmatprep.subr.mxu0 0.0
    %1693 = vmatpush1.msra.mxu0 0.0
    %1694 = vmatprep.subr.mxu0 0.0
    %1695 = vmatpush1.msra.mxu0 0.0
    %1696 = vmatprep.subr.mxu0 0.0
    %1697 = vmatpush1.msra.mxu0 0.0
    %1698 = vmatprep.subr.mxu0 0.0
    %1699 = vmatpush1.msra.mxu0 0.0
    %1700 = vmatprep.subr.mxu0 0.0
    %1701 = vmatpush1.msra.mxu0 0.0
    %1702 = vmatprep.subr.mxu0 0.0
    %1703 = vmatpush1.msra.mxu0 0.0
    %1704 = vmatprep.subr.mxu0 0.0
    %1705 = vmatpush1.msra.mxu0 0.0
    %1706 = vmatprep.subr.mxu0 0.0
    %1707 = vmatpush1.msra.mxu0 0.0
    %1708 = vmatprep.mubr.f32.mxu0 0.0
    %1709 = vmatmul.mubr.f32.gmra.mrb[0].mxu0 %v1571
    %v1710 = vpop.f32.mrb[0].mxu0
    %v1711 = vadd.f32 %v1568, %v1710
    %v1712 = vpop.f32.mrb[0].mxu0
    %v1713 = vadd.f32 %v1568, %v1712
    %1714 = vdwg.mxu0
    %1715 = vmatprep.subr.mxu0 %v1539
    %1716 = vmatpush1.msra.mxu0 %v1538
    %1717 = vmatprep.subr.mxu0 %v1547
    %1718 = vmatpush1.msra.mxu0 %v1546
    %1719 = vmatprep.subr.mxu0 %v1555
    %1720 = vmatpush1.msra.mxu0 %v1554
    %1721 = vmatprep.subr.mxu0 %v1563
    %1722 = vmatpush1.msra.mxu0 %v1562
    %1723 = vmatprep.subr.mxu0 0.0
    %1724 = vmatpush1.msra.mxu0 0.0
    %1725 = vmatprep.subr.mxu0 0.0
    %1726 = vmatpush1.msra.mxu0 0.0
    %1727 = vmatprep.subr.mxu0 0.0
    %1728 = vmatpush1.msra.mxu0 0.0
    %1729 = vmatprep.subr.mxu0 0.0
    %1730 = vmatpush1.msra.mxu0 0.0
    %1731 = vmatprep.subr.mxu0 0.0
    %1732 = vmatpush1.msra.mxu0 0.0
    %1733 = vmatprep.subr.mxu0 0.0
    %1734 = vmatpush1.msra.mxu0 0.0
    %1735 = vmatprep.subr.mxu0 0.0
    %1736 = vmatpush1.msra.mxu0 0.0
    %1737 = vmatprep.subr.mxu0 0.0
    %1738 = vmatpush1.msra.mxu0 0.0
    %1739 = vmatprep.subr.mxu0 0.0
    %1740 = vmatpush1.msra.mxu0 0.0
    %1741 = vmatprep.subr.mxu0 0.0
    %1742 = vmatpush1.msra.mxu0 0.0
    %1743 = vmatprep.subr.mxu0 0.0
    %1744 = vmatpush1.msra.mxu0 0.0
    %1745 = vmatprep.subr.mxu0 0.0
    %1746 = vmatpush1.msra.mxu0 0.0
    %1747 = vmatprep.subr.mxu0 0.0
    %1748 = vmatpush1.msra.mxu0 0.0
    %1749 = vmatprep.subr.mxu0 0.0
    %1750 = vmatpush1.msra.mxu0 0.0
    %1751 = vmatprep.subr.mxu0 0.0
    %1752 = vmatpush1.msra.mxu0 0.0
    %1753 = vmatprep.subr.mxu0 0.0
    %1754 = vmatpush1.msra.mxu0 0.0
    %1755 = vmatprep.subr.mxu0 0.0
    %1756 = vmatpush1.msra.mxu0 0.0
    %1757 = vmatprep.subr.mxu0 0.0
    %1758 = vmatpush1.msra.mxu0 0.0
    %1759 = vmatprep.subr.mxu0 0.0
    %1760 = vmatpush1.msra.mxu0 0.0
    %1761 = vmatprep.subr.mxu0 0.0
    %1762 = vmatpush1.msra.mxu0 0.0
    %1763 = vmatprep.subr.mxu0 0.0
    %1764 = vmatpush1.msra.mxu0 0.0
    %1765 = vmatprep.subr.mxu0 0.0
    %1766 = vmatpush1.msra.mxu0 0.0
    %1767 = vmatprep.subr.mxu0 0.0
    %1768 = vmatpush1.msra.mxu0 0.0
    %1769 = vmatprep.subr.mxu0 0.0
    %1770 = vmatpush1.msra.mxu0 0.0
    %1771 = vmatprep.subr.mxu0 0.0
    %1772 = vmatpush1.msra.mxu0 0.0
    %1773 = vmatprep.subr.mxu0 0.0
    %1774 = vmatpush1.msra.mxu0 0.0
    %1775 = vmatprep.subr.mxu0 0.0
    %1776 = vmatpush1.msra.mxu0 0.0
    %1777 = vmatprep.subr.mxu0 0.0
    %1778 = vmatpush1.msra.mxu0 0.0
    %1779 = vmatprep.mubr.f32.mxu0 0.0
    %1780 = vmatmul.mubr.f32.gmra.mrb[0].mxu0 %v1571
    %v1781 = vpop.f32.mrb[0].mxu0
    %v1782 = vadd.f32 %v1568, %v1781
    %v1783 = vpop.f32.mrb[0].mxu0
    %v1784 = vadd.f32 %v1568, %v1783
    %1785 = vdwg.mxu0
    %1786 = vmatprep.subr.mxu0 %v1541
    %1787 = vmatpush1.msra.mxu0 %v1540
    %1788 = vmatprep.subr.mxu0 %v1549
    %1789 = vmatpush1.msra.mxu0 %v1548
    %1790 = vmatprep.subr.mxu0 %v1557
    %1791 = vmatpush1.msra.mxu0 %v1556
    %1792 = vmatprep.subr.mxu0 %v1565
    %1793 = vmatpush1.msra.mxu0 %v1564
    %1794 = vmatprep.subr.mxu0 0.0
    %1795 = vmatpush1.msra.mxu0 0.0
    %1796 = vmatprep.subr.mxu0 0.0
    %1797 = vmatpush1.msra.mxu0 0.0
    %1798 = vmatprep.subr.mxu0 0.0
    %1799 = vmatpush1.msra.mxu0 0.0
    %1800 = vmatprep.subr.mxu0 0.0
    %1801 = vmatpush1.msra.mxu0 0.0
    %1802 = vmatprep.subr.mxu0 0.0
    %1803 = vmatpush1.msra.mxu0 0.0
    %1804 = vmatprep.subr.mxu0 0.0
    %1805 = vmatpush1.msra.mxu0 0.0
    %1806 = vmatprep.subr.mxu0 0.0
    %1807 = vmatpush1.msra.mxu0 0.0
    %1808 = vmatprep.subr.mxu0 0.0
    %1809 = vmatpush1.msra.mxu0 0.0
    %1810 = vmatprep.subr.mxu0 0.0
    %1811 = vmatpush1.msra.mxu0 0.0
    %1812 = vmatprep.subr.mxu0 0.0
    %1813 = vmatpush1.msra.mxu0 0.0
    %1814 = vmatprep.subr.mxu0 0.0
    %1815 = vmatpush1.msra.mxu0 0.0
    %1816 = vmatprep.subr.mxu0 0.0
    %1817 = vmatpush1.msra.mxu0 0.0
    %1818 = vmatprep.subr.mxu0 0.0
    %1819 = vmatpush1.msra.mxu0 0.0
    %1820 = vmatprep.subr.mxu0 0.0
    %1821 = vmatpush1.msra.mxu0 0.0
    %1822 = vmatprep.subr.mxu0 0.0
    %1823 = vmatpush1.msra.mxu0 0.0
    %1824 = vmatprep.subr.mxu0 0.0
    %1825 = vmatpush1.msra.mxu0 0.0
    %1826 = vmatprep.subr.mxu0 0.0
    %1827 = vmatpush1.msra.mxu0 0.0
    %1828 = vmatprep.subr.mxu0 0.0
    %1829 = vmatpush1.msra.mxu0 0.0
    %1830 = vmatprep.subr.mxu0 0.0
    %1831 = vmatpush1.msra.mxu0 0.0
    %1832 = vmatprep.subr.mxu0 0.0
    %1833 = vmatpush1.msra.mxu0 0.0
    %1834 = vmatprep.subr.mxu0 0.0
    %1835 = vmatpush1.msra.mxu0 0.0
    %1836 = vmatprep.subr.mxu0 0.0
    %1837 = vmatpush1.msra.mxu0 0.0
    %1838 = vmatprep.subr.mxu0 0.0
    %1839 = vmatpush1.msra.mxu0 0.0
    %1840 = vmatprep.subr.mxu0 0.0
    %1841 = vmatpush1.msra.mxu0 0.0
    %1842 = vmatprep.subr.mxu0 0.0
    %1843 = vmatpush1.msra.mxu0 0.0
    %1844 = vmatprep.subr.mxu0 0.0
    %1845 = vmatpush1.msra.mxu0 0.0
    %1846 = vmatprep.subr.mxu0 0.0
    %1847 = vmatpush1.msra.mxu0 0.0
    %1848 = vmatprep.subr.mxu0 0.0
    %1849 = vmatpush1.msra.mxu0 0.0
    %1850 = vmatprep.mubr.f32.mxu0 0.0
    %1851 = vmatmul.mubr.f32.gmra.mrb[0].mxu0 %v1571
    %v1852 = vpop.f32.mrb[0].mxu0
    %v1853 = vadd.f32 %v1568, %v1852
    %v1854 = vpop.f32.mrb[0].mxu0
    %v1855 = vadd.f32 %v1568, %v1854
    %1856 = vdwg.mxu0
    %v1865 = vcombine.low %v1640, %v1642
    %v1866 = vcombine.low %v1711, %v1713
    %v1867 = vcombine.low %v1782, %v1784
    %v1868 = vcombine.low %v1853, %v1855
    %v1870 = vunpack.c.l.s4 1966171168
    %v1871 = vunpack.c.0.s8 %v1870
    %v1872 = vlaneseq
    %v1873 = vshrl.u32 %v1872, 7
    %v1874 = vsub.s32 %v1871, %v1873
    %v1875 = vrot.slane %v1865, %v1874
    %v1877 = vunpack.c.l.s4 1966171168
    %v1878 = vunpack.c.0.s8 %v1877
    %v1879 = vlaneseq
    %v1880 = vshrl.u32 %v1879, 7
    %v1881 = vsub.s32 %v1878, %v1880
    %v1882 = vrot.slane %v1866, %v1881
    %v1884 = vunpack.c.l.s4 1966171168
    %v1885 = vunpack.c.0.s8 %v1884
    %v1886 = vlaneseq
    %v1887 = vshrl.u32 %v1886, 7
    %v1888 = vsub.s32 %v1885, %v1887
    %v1889 = vrot.slane %v1867, %v1888
    %v1891 = vunpack.c.l.s4 1966171168
    %v1892 = vunpack.c.0.s8 %v1891
    %v1893 = vlaneseq
    %v1894 = vshrl.u32 %v1893, 7
    %v1895 = vsub.s32 %v1892, %v1894
    %v1896 = vrot.slane %v1868, %v1895
    %v1897 = vcombine.low %v1875, %v1882
    %v1898 = vcombine.low %v1889, %v1896
    %v1900 = vunpack.c.l.s4 1966171168
    %v1901 = vunpack.c.0.s8 %v1900
    %v1902 = vlaneseq
    %v1903 = vshrl.u32 %v1902, 7
    %v1904 = vsub.s32 %v1901, %v1903
    %v1905 = vrot.slane %v1897, %v1904
    %v1907 = vunpack.c.l.s4 1966171168
    %v1908 = vunpack.c.0.s8 %v1907
    %v1909 = vlaneseq
    %v1910 = vshrl.u32 %v1909, 7
    %v1911 = vsub.s32 %v1908, %v1910
    %v1912 = vrot.slane %v1898, %v1911
    %v1913 = vcombine.low %v1905, %v1912
    %1915 = vst [vmem:[#allocation3] sm:$0xff] %v1913
    // Predicated region
    $region30: #{tpu_custom_call.1} parent=1 // pred_check
      _
    $region31: #{tpu_custom_call.1} parent=1 // pred_check_branch
      %1917 = sbr.rel (0) target = $region33
    $region32: #{tpu_custom_call.1} parent=1 // pred_region
      %s1919 = ssub.s32 128, 128
      %1920 = vsyncadd [#allocation4], %s1919
      %s1922 = sshll.u32 [#allocation3], 4
      %s1923 = int_to_ptr.vmem [resolvable:$true] %s1922
      %1925 = dma.vmem_to_hbm [thread:$0]  %s1923, 128, %s7, [#allocation4]
    $region33: #{tpu_custom_call.1} parent=1 // pred_fallthru
      _
    // Predicated region
    $region34: #{tpu_custom_call.1} parent=1 // pred_check
      _
    $region35: #{tpu_custom_call.1} parent=1 // pred_check_branch
      %1927 = sbr.rel (0) target = $region37
    $region36: #{tpu_custom_call.1} parent=1 // pred_region
      %1928 = dma.done [#allocation4], 128
    $region37: #{tpu_custom_call.1} parent=1 // pred_fallthru
      _
    %1929 = vsyncpa [#allocation4], 1

</llo_original>
